<compile_context>
chip_gen: v6e
topology: v6e:2x2x1
jax: 0.10.0
libtpu: 0.0.40
codegen_flags: <defaults>
</compile_context>

<pallas_src>
import functools

import jax
import jax.numpy as jnp
from jax.experimental import pallas as pl
from jax.experimental.pallas import tpu as pltpu


# ----------------------------- fused kernel --------------------------------

def _vae_fused_kernel(
    # inputs
    x_ref, eps_ref,
    we1_ref, be1_ref, wms_ref, bms_ref,
    wd1_ref, bd1_ref, wd2_ref, bd2_ref,
    # outputs
    dec_ref, zmean_ref, zlogstd_ref, losses_ref,
    # scratch
    hdec_ref, erracc_ref, klps_ref,
    *, beta, z_dim, inv_d, inv_b, tn,
):
    j = pl.program_id(0)
    nj = pl.num_programs(0)

    # ---- step 0: encoder, reparameterize, decoder layer 1 (kept in VMEM) ----
    @pl.when(j == 0)
    def _encode_and_reparam():
        x_bf = x_ref[...].astype(jnp.bfloat16)
        h = jnp.dot(x_bf, we1_ref[...], preferred_element_type=jnp.float32)
        h = jnp.maximum(h + be1_ref[...], 0.0)                 # f32 ReLU
        h_bf = h.astype(jnp.bfloat16)

        # fused mean / log_std head: single (Hd, 2Z) matmul, static lane split.
        zp = jnp.dot(h_bf, wms_ref[...],
                     preferred_element_type=jnp.float32) + bms_ref[...]
        zm = zp[:, :z_dim]
        zls = zp[:, z_dim:]
        zmean_ref[...] = zm
        zlogstd_ref[...] = zls

        # per-sample KL (mean over latent dims == loss_reduction='mean')
        kl_elem = (jnp.exp(2.0 * zls) + zm * zm) * 0.5 - 0.5 - zls
        klps_ref[...] = jnp.mean(kl_elem, axis=1, keepdims=True)

        # z = mean + eps * exp(log_std)   (eps ~ N(0,1), generated outside)
        z = zm + eps_ref[...] * jnp.exp(zls)

        hd = jnp.dot(z.astype(jnp.bfloat16), wd1_ref[...],
                     preferred_element_type=jnp.float32)
        hdec_ref[...] = jnp.maximum(hd + bd1_ref[...], 0.0).astype(jnp.bfloat16)
        erracc_ref[...] = jnp.zeros_like(erracc_ref)

    # ---- every step: decoder output tile j + partial reconstruction error ----
    dec = jnp.dot(hdec_ref[...], wd2_ref[...],
                  preferred_element_type=jnp.float32) + bd2_ref[...]
    dec_ref[...] = dec

    if tn == x_ref.shape[1]:        # single-tile fast path (grid == (1,))
        x_tile = x_ref[...]
    else:
        x_tile = x_ref[:, pl.ds(pl.multiple_of(j * tn, tn), tn)]
    diff = x_tile - dec
    erracc_ref[...] += jnp.sum(diff * diff, axis=1, keepdims=True)

    # ---- last step: batch-mean losses, packed into one (1, 3) output ----
    @pl.when(j == nj - 1)
    def _finalize_losses():
        err = erracc_ref[...] * inv_d                          # (B,1) mean over features
        kl_ps = klps_ref[...]                                  # (B,1)
        loss_ps = err + beta * kl_ps                           # (B,1)
        col = jax.lax.broadcasted_iota(jnp.int32, (loss_ps.shape[0], 3), 1)
        stats = jnp.where(col == 0, loss_ps,
                          jnp.where(col == 1, err, kl_ps))     # (B,3)
        losses_ref[...] = jnp.sum(stats, axis=0, keepdims=True) * inv_b


def vae_forward_fused(x_flat, eps, params, *, beta, tn, vmem_limit_bytes):
    B, D = x_flat.shape
    Z = eps.shape[1]
    Hd = params["be1"].shape[1]
    assert D % tn == 0
    n_tiles = D // tn

    kernel = functools.partial(
        _vae_fused_kernel, beta=float(beta), z_dim=Z,
        inv_d=1.0 / D, inv_b=1.0 / B, tn=tn)

    const = lambda j: (0, 0)       # resident block (loaded once)
    tiled_n = lambda j: (0, j)     # tiled / pipelined along output-D

    out_shape = (
        jax.ShapeDtypeStruct((B, D), jnp.float32),    # decoded (flat)
        jax.ShapeDtypeStruct((B, Z), jnp.float32),    # z_mean
        jax.ShapeDtypeStruct((B, Z), jnp.float32),    # z_log_std
        jax.ShapeDtypeStruct((1, 3), jnp.float32),    # [loss, -log p(x|z), kl]
    )

    in_specs = [
        pl.BlockSpec((B, D), const),        # x (encoder input + loss target)
        pl.BlockSpec((B, Z), const),        # eps
        pl.BlockSpec((D, Hd), const),       # We1 (bf16)
        pl.BlockSpec((1, Hd), const),       # be1
        pl.BlockSpec((Hd, 2 * Z), const),   # W_mean|W_logstd fused (bf16)
        pl.BlockSpec((1, 2 * Z), const),    # b_mean|b_logstd fused
        pl.BlockSpec((Z, Hd), const),       # Wd1 (bf16)
        pl.BlockSpec((1, Hd), const),       # bd1
        pl.BlockSpec((Hd, tn), tiled_n),    # Wd2 tile (bf16, pipelined)
        pl.BlockSpec((1, tn), tiled_n),     # bd2 tile
    ]
    out_specs = (
        pl.BlockSpec((B, tn), tiled_n),     # decoded tile (lane-dense)
        pl.BlockSpec((B, Z), const),
        pl.BlockSpec((B, Z), const),
        pl.BlockSpec((1, 3), const),
    )
    scratch_shapes = [
        pltpu.VMEM((B, Hd), jnp.bfloat16),  # decoder hidden activations (bf16)
        pltpu.VMEM((B, 1), jnp.float32),    # per-sample squared-error accumulator
        pltpu.VMEM((B, 1), jnp.float32),    # per-sample KL
    ]

    return pl.pallas_call(
        kernel,
        out_shape=out_shape,
        grid=(n_tiles,),
        in_specs=in_specs,
        out_specs=out_specs,
        scratch_shapes=scratch_shapes,
        compiler_params=pltpu.CompilerParams(
            dimension_semantics=("arbitrary",),
            vmem_limit_bytes=int(vmem_limit_bytes)),
    )(x_flat, eps,
      params["We1"], params["be1"], params["Wms"], params["bms"],
      params["Wd1"], params["bd1"], params["Wd2"], params["bd2"])


# -------------------- VMEM-budget-driven decoder tiling ---------------------

def _pick_decoder_tile(D, Hd, Z, B, budget_bytes):
    """Largest decoder-output tile (divisor of D) whose resident+tile plan fits."""
    def plan_bytes(tn):
        resident = (
            D * Hd * 2 + Hd * (2 * Z) * 2 + Z * Hd * 2      # resident bf16 weights
            + (2 * Hd + 2 * Z) * 4                           # resident biases (f32)
            + B * D * 4 + B * Z * 4                          # x, eps
            + 2 * B * Z * 4 + 3 * 4                          # z_mean/z_log_std/losses out
            + B * Hd * 2 + 2 * B * 4)                        # scratch (hdec bf16, 2x (B,1))
        tile = 2 * (Hd * tn * 2 + tn * 4 + B * tn * 4)       # double-buffered Wd2/bd2/dec
        return resident + tile

    cands = sorted({D} | {t for t in range(128, D, 128) if D % t == 0},
                   reverse=True)
    for tn in cands:
        if plan_bytes(tn) <= budget_bytes:
            return tn, plan_bytes(tn)
    return cands[-1], plan_bytes(cands[-1])     # smallest; rely on vmem limit


# ------------------------------ jitted wrapper ------------------------------

@functools.partial(jax.jit,
                   static_argnames=("beta", "tn", "vmem_limit_bytes"))
def _vae_forward_jit(imgs, rng, params, *, beta, tn, vmem_limit_bytes):
    B = imgs.shape[0]
    x_flat = imgs.reshape(B, -1).astype(jnp.float32)
    Z = params["bms"].shape[1] // 2
    eps = jax.random.normal(rng, (B, Z), jnp.float32)

    dec_flat, _zm, _zls, losses = vae_forward_fused(
        x_flat, eps, params, beta=beta, tn=tn,
        vmem_limit_bytes=vmem_limit_bytes)

    return {
        "loss": losses[0, 0],
        "-log p(x|z)": losses[0, 1],
        "kl": losses[0, 2],
        "decoded_imgs": dec_flat.reshape(imgs.shape),
    }


# ------------------------------ VAE wrapper --------------------------------

class PallasVAE:
    """VAE with an MLP encoder (D -> H -> 2*Z) and MLP decoder (Z -> H -> D).

    Matches the PyTorch module defaults: loss_reduction='mean', beta=1,
    first_decoder_conv_depth=None.  Weights stream as bf16, compute/accumulate
    in f32 on the MXU.
    """

    # conservative plan budget: safe on v7x's 32 MiB scoped / 64 MiB physical VMEM
    VMEM_PLAN_BUDGET = 24 << 20

    def __init__(self, img_shape, hidden, latent_dim, beta=1.0, seed=0):
        C, H, W = img_shape
        D = C * H * W
        self.img_shape = img_shape
        self.D = D
        self.hidden = hidden
        self.Z_DIM = latent_dim
        self.beta = float(beta)

        def init_w(key, shape, fan_in):
            w = (jax.random.normal(key, shape, jnp.float32)
                 * (1.0 / jnp.sqrt(jnp.float32(fan_in))))
            return w.astype(jnp.bfloat16)       # bf16 weights, f32 MXU accumulate

        k = jax.random.split(jax.random.PRNGKey(seed), 4)
        self.params = dict(
            We1=init_w(k[0], (D, hidden), D),
            be1=jnp.zeros((1, hidden), jnp.float32),
            Wms=init_w(k[1], (hidden, 2 * latent_dim), hidden),   # fused mean|log_std
            bms=jnp.zeros((1, 2 * latent_dim), jnp.float32),
            Wd1=init_w(k[2], (latent_dim, hidden), latent_dim),
            bd1=jnp.zeros((1, hidden), jnp.float32),
            Wd2=init_w(k[3], (hidden, D), hidden),
            bd2=jnp.zeros((1, D), jnp.float32),
        )

    def forward(self, imgs, rng):
        B = imgs.shape[0]
        tn, plan = _pick_decoder_tile(self.D, self.hidden, self.Z_DIM, B,
                                      self.VMEM_PLAN_BUDGET)
        # explicit scoped-VMEM limit: 2x the plan, clamped to a v7x-safe 32 MiB
        vmem_limit = int(min(max(2 * plan, 8 << 20), 32 << 20))
        return _vae_forward_jit(imgs, rng, self.params,
                                beta=self.beta, tn=tn,
                                vmem_limit_bytes=vmem_limit)


# --------------------------------- main -------------------------------------

if __name__ == "__main__":
    B, C, H, W = 8, 4, 16, 16          # NCHW, D = 1024
    HIDDEN, Z_DIM = 256, 128

    key = jax.random.PRNGKey(0)
    k_img, k_eps = jax.random.split(key)
    imgs = jax.random.normal(k_img, (B, C, H, W), jnp.float32)

    vae = PallasVAE(img_shape=(C, H, W), hidden=HIDDEN, latent_dim=Z_DIM,
                    beta=1.0, seed=0)

    out = vae.forward(imgs, k_eps)
    jax.block_until_ready(out["loss"])
    jax.block_until_ready(out["decoded_imgs"])

    assert out["decoded_imgs"].shape == (B, C, H, W)
    assert out["loss"].shape == ()
    assert out["-log p(x|z)"].shape == ()
    assert out["kl"].shape == ()
    assert bool(jnp.isfinite(out["loss"]))
    assert bool(jnp.isfinite(out["-log p(x|z)"]))
    assert bool(jnp.isfinite(out["kl"]))
    print("KERNEL_OK")
</pallas_src>

<mosaic_0001>
module attributes {stable_mosaic.version = 11 : i64} {
  func.func @_vae_fused_kernel(%arg0: i32, %arg1: memref<8x1024xf32, #tpu.memory_space<vmem>>, %arg2: memref<8x128xf32, #tpu.memory_space<vmem>>, %arg3: memref<1024x256xbf16, #tpu.memory_space<vmem>>, %arg4: memref<1x256xf32, #tpu.memory_space<vmem>>, %arg5: memref<256x256xbf16, #tpu.memory_space<vmem>>, %arg6: memref<1x256xf32, #tpu.memory_space<vmem>>, %arg7: memref<128x256xbf16, #tpu.memory_space<vmem>>, %arg8: memref<1x256xf32, #tpu.memory_space<vmem>>, %arg9: memref<256x1024xbf16, #tpu.memory_space<vmem>>, %arg10: memref<1x1024xf32, #tpu.memory_space<vmem>>, %arg11: memref<8x1024xf32, #tpu.memory_space<vmem>>, %arg12: memref<8x128xf32, #tpu.memory_space<vmem>>, %arg13: memref<8x128xf32, #tpu.memory_space<vmem>>, %arg14: memref<1x3xf32, #tpu.memory_space<vmem>>, %arg15: memref<8x256xbf16, #tpu.memory_space<vmem>>, %arg16: memref<8x1xf32, #tpu.memory_space<vmem>>, %arg17: memref<8x1xf32, #tpu.memory_space<vmem>>) attributes {dimension_semantics = [#tpu.dimension_semantics<arbitrary>], iteration_bounds = array<i64: 1>, scalar_prefetch = 0 : i64, scratch_operands = 3 : i64, tpu.core_type = #tpu.core_type<tc>, window_params = [{pipeline_mode = #tpu.pipeline_mode<synchronous>, transform_indices = @transform_0, window_bounds = array<i64: 8, 1024>}, {pipeline_mode = #tpu.pipeline_mode<synchronous>, transform_indices = @transform_1, window_bounds = array<i64: 8, 128>}, {pipeline_mode = #tpu.pipeline_mode<synchronous>, transform_indices = @transform_2, window_bounds = array<i64: 1024, 256>}, {pipeline_mode = #tpu.pipeline_mode<synchronous>, transform_indices = @transform_3, window_bounds = array<i64: 1, 256>}, {pipeline_mode = #tpu.pipeline_mode<synchronous>, transform_indices = @transform_4, window_bounds = array<i64: 256, 256>}, {pipeline_mode = #tpu.pipeline_mode<synchronous>, transform_indices = @transform_5, window_bounds = array<i64: 1, 256>}, {pipeline_mode = #tpu.pipeline_mode<synchronous>, transform_indices = @transform_6, window_bounds = array<i64: 128, 256>}, {pipeline_mode = #tpu.pipeline_mode<synchronous>, transform_indices = @transform_7, window_bounds = array<i64: 1, 256>}, {transform_indices = @transform_8, window_bounds = array<i64: 256, 1024>}, {transform_indices = @transform_9, window_bounds = array<i64: 1, 1024>}, {transform_indices = @transform_10, window_bounds = array<i64: 8, 1024>}, {pipeline_mode = #tpu.pipeline_mode<synchronous>, transform_indices = @transform_11, window_bounds = array<i64: 8, 128>}, {pipeline_mode = #tpu.pipeline_mode<synchronous>, transform_indices = @transform_12, window_bounds = array<i64: 8, 128>}, {pipeline_mode = #tpu.pipeline_mode<synchronous>, transform_indices = @transform_13, window_bounds = array<i64: 1, 3>}]} {
    %c0_i32 = arith.constant 0 : i32
    %0 = arith.cmpi eq, %arg0, %c0_i32 : i32
    %1 = arith.extui %0 : i1 to i32
    %c0_i32_0 = arith.constant 0 : i32
    %2 = arith.cmpi ne, %1, %c0_i32_0 : i32
    scf.if %2 {
      %c0_17 = arith.constant 0 : index
      %c0_18 = arith.constant 0 : index
      %21 = vector.load %arg1[%c0_17, %c0_18] : memref<8x1024xf32, #tpu.memory_space<vmem>>, vector<8x1024xf32>
      %22 = arith.truncf %21 : vector<8x1024xf32> to vector<8x1024xbf16>
      %c0_19 = arith.constant 0 : index
      %c0_20 = arith.constant 0 : index
      %23 = vector.load %arg3[%c0_19, %c0_20] : memref<1024x256xbf16, #tpu.memory_space<vmem>>, vector<1024x256xbf16>
      %cst_21 = arith.constant dense<0.000000e+00> : vector<8x256xf32>
      %24 = tpu.matmul %22, %23, %cst_21 {dimension_numbers = #tpu.dot_dimension_numbers<[1], [0], [0], [1], [0, 0, 1, 1], [], []>} : vector<8x1024xbf16>, vector<1024x256xbf16>, vector<8x256xf32> -> vector<8x256xf32>
      %c0_22 = arith.constant 0 : index
      %c0_23 = arith.constant 0 : index
      %25 = vector.load %arg4[%c0_22, %c0_23] : memref<1x256xf32, #tpu.memory_space<vmem>>, vector<1x256xf32>
      %26 = vector.broadcast %25 : vector<1x256xf32> to vector<8x256xf32>
      %27 = arith.addf %24, %26 : vector<8x256xf32>
      %cst_24 = arith.constant 0.000000e+00 : f32
      %28 = vector.broadcast %cst_24 : f32 to vector<8x256xf32>
      %29 = arith.maximumf %27, %28 : vector<8x256xf32>
      %30 = arith.truncf %29 : vector<8x256xf32> to vector<8x256xbf16>
      %c0_25 = arith.constant 0 : index
      %c0_26 = arith.constant 0 : index
      %31 = vector.load %arg5[%c0_25, %c0_26] : memref<256x256xbf16, #tpu.memory_space<vmem>>, vector<256x256xbf16>
      %cst_27 = arith.constant dense<0.000000e+00> : vector<8x256xf32>
      %32 = tpu.matmul %30, %31, %cst_27 {dimension_numbers = #tpu.dot_dimension_numbers<[1], [0], [0], [1], [0, 0, 1, 1], [], []>} : vector<8x256xbf16>, vector<256x256xbf16>, vector<8x256xf32> -> vector<8x256xf32>
      %c0_28 = arith.constant 0 : index
      %c0_29 = arith.constant 0 : index
      %33 = vector.load %arg6[%c0_28, %c0_29] : memref<1x256xf32, #tpu.memory_space<vmem>>, vector<1x256xf32>
      %34 = vector.broadcast %33 : vector<1x256xf32> to vector<8x256xf32>
      %35 = arith.addf %32, %34 : vector<8x256xf32>
      %36 = vector.extract_strided_slice %35 {offsets = [0, 0], sizes = [8, 128], strides = [1, 1]} : vector<8x256xf32> to vector<8x128xf32>
      %37 = vector.extract_strided_slice %35 {offsets = [0, 128], sizes = [8, 128], strides = [1, 1]} : vector<8x256xf32> to vector<8x128xf32>
      %c0_30 = arith.constant 0 : index
      %c0_31 = arith.constant 0 : index
      %38 = vector.load %arg12[%c0_30, %c0_31] : memref<8x128xf32, #tpu.memory_space<vmem>>, vector<8x128xf32>
      tpu.vector_store %arg12[%c0_30, %c0_31], %36 {strides = array<i32>} : memref<8x128xf32, #tpu.memory_space<vmem>>, vector<8x128xf32>,
      %c0_32 = arith.constant 0 : index
      %c0_33 = arith.constant 0 : index
      %39 = vector.load %arg13[%c0_32, %c0_33] : memref<8x128xf32, #tpu.memory_space<vmem>>, vector<8x128xf32>
      tpu.vector_store %arg13[%c0_32, %c0_33], %37 {strides = array<i32>} : memref<8x128xf32, #tpu.memory_space<vmem>>, vector<8x128xf32>,
      %cst_34 = arith.constant 2.000000e+00 : f32
      %40 = vector.broadcast %cst_34 : f32 to vector<8x128xf32>
      %41 = arith.mulf %40, %37 : vector<8x128xf32>
      %42 = math.exp %41 : vector<8x128xf32>
      %43 = arith.mulf %36, %36 : vector<8x128xf32>
      %44 = arith.addf %42, %43 : vector<8x128xf32>
      %cst_35 = arith.constant 5.000000e-01 : f32
      %45 = vector.broadcast %cst_35 : f32 to vector<8x128xf32>
      %46 = arith.mulf %44, %45 : vector<8x128xf32>
      %cst_36 = arith.constant 5.000000e-01 : f32
      %47 = vector.broadcast %cst_36 : f32 to vector<8x128xf32>
      %48 = arith.subf %46, %47 : vector<8x128xf32>
      %49 = arith.subf %48, %37 : vector<8x128xf32>
      %cst_37 = arith.constant dense<0.000000e+00> : vector<8xf32>
      %50 = vector.multi_reduction <add>, %49, %cst_37 [1] : vector<8x128xf32> to vector<8xf32>
      %51 = vector.shape_cast %50 : vector<8xf32> to vector<8x1xf32>
      %cst_38 = arith.constant 1.280000e+02 : f32
      %52 = vector.broadcast %cst_38 : f32 to vector<8x1xf32>
      %53 = arith.divf %51, %52 : vector<8x1xf32>
      %c0_39 = arith.constant 0 : index
      %c0_40 = arith.constant 0 : index
      %54 = vector.load %arg17[%c0_39, %c0_40] : memref<8x1xf32, #tpu.memory_space<vmem>>, vector<8x1xf32>
      tpu.vector_store %arg17[%c0_39, %c0_40], %53 {strides = array<i32>} : memref<8x1xf32, #tpu.memory_space<vmem>>, vector<8x1xf32>,
      %c0_41 = arith.constant 0 : index
      %c0_42 = arith.constant 0 : index
      %55 = vector.load %arg2[%c0_41, %c0_42] : memref<8x128xf32, #tpu.memory_space<vmem>>, vector<8x128xf32>
      %56 = math.exp %37 : vector<8x128xf32>
      %57 = arith.mulf %55, %56 : vector<8x128xf32>
      %58 = arith.addf %36, %57 : vector<8x128xf32>
      %59 = arith.truncf %58 : vector<8x128xf32> to vector<8x128xbf16>
      %c0_43 = arith.constant 0 : index
      %c0_44 = arith.constant 0 : index
      %60 = vector.load %arg7[%c0_43, %c0_44] : memref<128x256xbf16, #tpu.memory_space<vmem>>, vector<128x256xbf16>
      %cst_45 = arith.constant dense<0.000000e+00> : vector<8x256xf32>
      %61 = tpu.matmul %59, %60, %cst_45 {dimension_numbers = #tpu.dot_dimension_numbers<[1], [0], [0], [1], [0, 0, 1, 1], [], []>} : vector<8x128xbf16>, vector<128x256xbf16>, vector<8x256xf32> -> vector<8x256xf32>
      %c0_46 = arith.constant 0 : index
      %c0_47 = arith.constant 0 : index
      %62 = vector.load %arg8[%c0_46, %c0_47] : memref<1x256xf32, #tpu.memory_space<vmem>>, vector<1x256xf32>
      %63 = vector.broadcast %62 : vector<1x256xf32> to vector<8x256xf32>
      %64 = arith.addf %61, %63 : vector<8x256xf32>
      %cst_48 = arith.constant 0.000000e+00 : f32
      %65 = vector.broadcast %cst_48 : f32 to vector<8x256xf32>
      %66 = arith.maximumf %64, %65 : vector<8x256xf32>
      %67 = arith.truncf %66 : vector<8x256xf32> to vector<8x256xbf16>
      %c0_49 = arith.constant 0 : index
      %c0_50 = arith.constant 0 : index
      %68 = vector.load %arg15[%c0_49, %c0_50] : memref<8x256xbf16, #tpu.memory_space<vmem>>, vector<8x256xbf16>
      tpu.vector_store %arg15[%c0_49, %c0_50], %67 {strides = array<i32>} : memref<8x256xbf16, #tpu.memory_space<vmem>>, vector<8x256xbf16>,
      %cst_51 = arith.constant 0.000000e+00 : f32
      %69 = vector.broadcast %cst_51 : f32 to vector<8x1xf32>
      %c0_52 = arith.constant 0 : index
      %c0_53 = arith.constant 0 : index
      %70 = vector.load %arg16[%c0_52, %c0_53] : memref<8x1xf32, #tpu.memory_space<vmem>>, vector<8x1xf32>
      tpu.vector_store %arg16[%c0_52, %c0_53], %69 {strides = array<i32>} : memref<8x1xf32, #tpu.memory_space<vmem>>, vector<8x1xf32>,
    } else {
    }
    %c0 = arith.constant 0 : index
    %c0_1 = arith.constant 0 : index
    %3 = vector.load %arg15[%c0, %c0_1] : memref<8x256xbf16, #tpu.memory_space<vmem>>, vector<8x256xbf16>
    %c0_2 = arith.constant 0 : index
    %c0_3 = arith.constant 0 : index
    %4 = vector.load %arg9[%c0_2, %c0_3] : memref<256x1024xbf16, #tpu.memory_space<vmem>>, vector<256x1024xbf16>
    %cst = arith.constant dense<0.000000e+00> : vector<8x1024xf32>
    %5 = tpu.matmul %3, %4, %cst {dimension_numbers = #tpu.dot_dimension_numbers<[1], [0], [0], [1], [0, 0, 1, 1], [], []>} : vector<8x256xbf16>, vector<256x1024xbf16>, vector<8x1024xf32> -> vector<8x1024xf32>
    %c0_4 = arith.constant 0 : index
    %c0_5 = arith.constant 0 : index
    %6 = vector.load %arg10[%c0_4, %c0_5] : memref<1x1024xf32, #tpu.memory_space<vmem>>, vector<1x1024xf32>
    %7 = vector.broadcast %6 : vector<1x1024xf32> to vector<8x1024xf32>
    %8 = arith.addf %5, %7 : vector<8x1024xf32>
    %c0_6 = arith.constant 0 : index
    %c0_7 = arith.constant 0 : index
    %9 = vector.load %arg11[%c0_6, %c0_7] : memref<8x1024xf32, #tpu.memory_space<vmem>>, vector<8x1024xf32>
    tpu.vector_store %arg11[%c0_6, %c0_7], %8 {strides = array<i32>} : memref<8x1024xf32, #tpu.memory_space<vmem>>, vector<8x1024xf32>,
    %c0_8 = arith.constant 0 : index
    %c0_9 = arith.constant 0 : index
    %10 = vector.load %arg1[%c0_8, %c0_9] : memref<8x1024xf32, #tpu.memory_space<vmem>>, vector<8x1024xf32>
    %11 = arith.subf %10, %8 : vector<8x1024xf32>
    %c0_10 = arith.constant 0 : index
    %c0_11 = arith.constant 0 : index
    %12 = vector.load %arg16[%c0_10, %c0_11] : memref<8x1xf32, #tpu.memory_space<vmem>>, vector<8x1xf32>
    %13 = arith.mulf %11, %11 : vector<8x1024xf32>
    %cst_12 = arith.constant dense<0.000000e+00> : vector<8xf32>
    %14 = vector.multi_reduction <add>, %13, %cst_12 [1] : vector<8x1024xf32> to vector<8xf32>
    %15 = vector.shape_cast %14 : vector<8xf32> to vector<8x1xf32>
    %16 = arith.addf %12, %15 : vector<8x1xf32>
    %c0_13 = arith.constant 0 : index
    %c0_14 = arith.constant 0 : index
    %17 = vector.load %arg16[%c0_13, %c0_14] : memref<8x1xf32, #tpu.memory_space<vmem>>, vector<8x1xf32>
    tpu.vector_store %arg16[%c0_13, %c0_14], %16 {strides = array<i32>} : memref<8x1xf32, #tpu.memory_space<vmem>>, vector<8x1xf32>,
    %c0_i32_15 = arith.constant 0 : i32
    %18 = arith.cmpi eq, %arg0, %c0_i32_15 : i32
    %19 = arith.extui %18 : i1 to i32
    %c0_i32_16 = arith.constant 0 : i32
    %20 = arith.cmpi ne, %19, %c0_i32_16 : i32
    scf.if %20 {
      %c0_17 = arith.constant 0 : index
      %c0_18 = arith.constant 0 : index
      %21 = vector.load %arg16[%c0_17, %c0_18] : memref<8x1xf32, #tpu.memory_space<vmem>>, vector<8x1xf32>
      %cst_19 = arith.constant 9.765625E-4 : f32
      %22 = vector.broadcast %cst_19 : f32 to vector<8x1xf32>
      %23 = arith.mulf %21, %22 : vector<8x1xf32>
      %c0_20 = arith.constant 0 : index
      %c0_21 = arith.constant 0 : index
      %24 = vector.load %arg17[%c0_20, %c0_21] : memref<8x1xf32, #tpu.memory_space<vmem>>, vector<8x1xf32>
      %cst_22 = arith.constant 1.000000e+00 : f32
      %25 = vector.broadcast %cst_22 : f32 to vector<8x1xf32>
      %26 = arith.mulf %25, %24 : vector<8x1xf32>
      %27 = arith.addf %23, %26 : vector<8x1xf32>
      %28 = tpu.iota {dimensions = array<i32: 1>} : vector<8x3xi32>
      %c0_i32_23 = arith.constant 0 : i32
      %29 = vector.broadcast %c0_i32_23 : i32 to vector<8x3xi32>
      %30 = arith.cmpi eq, %28, %29 : vector<8x3xi32>
      %c1_i32 = arith.constant 1 : i32
      %31 = vector.broadcast %c1_i32 : i32 to vector<8x3xi32>
      %32 = arith.cmpi eq, %28, %31 : vector<8x3xi32>
      %33 = vector.shape_cast %23 : vector<8x1xf32> to vector<8x1xf32>
      %34 = vector.broadcast %33 : vector<8x1xf32> to vector<8x3xf32>
      %35 = vector.shape_cast %24 : vector<8x1xf32> to vector<8x1xf32>
      %36 = vector.broadcast %35 : vector<8x1xf32> to vector<8x3xf32>
      %37 = arith.select %32, %34, %36 : vector<8x3xi1>, vector<8x3xf32>
      %38 = vector.shape_cast %27 : vector<8x1xf32> to vector<8x1xf32>
      %39 = vector.broadcast %38 : vector<8x1xf32> to vector<8x3xf32>
      %40 = arith.select %30, %39, %37 : vector<8x3xi1>, vector<8x3xf32>
      %cst_24 = arith.constant dense<0.000000e+00> : vector<3xf32>
      %41 = vector.multi_reduction <add>, %40, %cst_24 [0] : vector<8x3xf32> to vector<3xf32>
      %42 = vector.shape_cast %41 : vector<3xf32> to vector<1x3xf32>
      %cst_25 = arith.constant 1.250000e-01 : f32
      %43 = vector.broadcast %cst_25 : f32 to vector<1x3xf32>
      %44 = arith.mulf %42, %43 : vector<1x3xf32>
      %c0_26 = arith.constant 0 : index
      %c0_27 = arith.constant 0 : index
      %45 = vector.load %arg14[%c0_26, %c0_27] : memref<1x3xf32, #tpu.memory_space<vmem>>, vector<1x3xf32>
      tpu.vector_store %arg14[%c0_26, %c0_27], %44 {strides = array<i32>} : memref<1x3xf32, #tpu.memory_space<vmem>>, vector<1x3xf32>,
    } else {
    }
    return
  }
  func.func @transform_0(%arg0: i32) -> (i32, i32) {
    %c0_i32 = arith.constant 0 : i32
    %c0_i32_0 = arith.constant 0 : i32
    %c0_i32_1 = arith.constant 0 : i32
    return %c0_i32, %c0_i32_0 : i32, i32
  }
  func.func @transform_1(%arg0: i32) -> (i32, i32) {
    %c0_i32 = arith.constant 0 : i32
    %c0_i32_0 = arith.constant 0 : i32
    %c0_i32_1 = arith.constant 0 : i32
    return %c0_i32, %c0_i32_0 : i32, i32
  }
  func.func @transform_2(%arg0: i32) -> (i32, i32) {
    %c0_i32 = arith.constant 0 : i32
    %c0_i32_0 = arith.constant 0 : i32
    %c0_i32_1 = arith.constant 0 : i32
    return %c0_i32, %c0_i32_0 : i32, i32
  }
  func.func @transform_3(%arg0: i32) -> (i32, i32) {
    %c0_i32 = arith.constant 0 : i32
    %c0_i32_0 = arith.constant 0 : i32
    %c0_i32_1 = arith.constant 0 : i32
    return %c0_i32, %c0_i32_0 : i32, i32
  }
  func.func @transform_4(%arg0: i32) -> (i32, i32) {
    %c0_i32 = arith.constant 0 : i32
    %c0_i32_0 = arith.constant 0 : i32
    %c0_i32_1 = arith.constant 0 : i32
    return %c0_i32, %c0_i32_0 : i32, i32
  }
  func.func @transform_5(%arg0: i32) -> (i32, i32) {
    %c0_i32 = arith.constant 0 : i32
    %c0_i32_0 = arith.constant 0 : i32
    %c0_i32_1 = arith.constant 0 : i32
    return %c0_i32, %c0_i32_0 : i32, i32
  }
  func.func @transform_6(%arg0: i32) -> (i32, i32) {
    %c0_i32 = arith.constant 0 : i32
    %c0_i32_0 = arith.constant 0 : i32
    %c0_i32_1 = arith.constant 0 : i32
    return %c0_i32, %c0_i32_0 : i32, i32
  }
  func.func @transform_7(%arg0: i32) -> (i32, i32) {
    %c0_i32 = arith.constant 0 : i32
    %c0_i32_0 = arith.constant 0 : i32
    %c0_i32_1 = arith.constant 0 : i32
    return %c0_i32, %c0_i32_0 : i32, i32
  }
  func.func @transform_8(%arg0: i32) -> (i32, i32) {
    %c0_i32 = arith.constant 0 : i32
    %c0_i32_0 = arith.constant 0 : i32
    return %c0_i32, %arg0 : i32, i32
  }
  func.func @transform_9(%arg0: i32) -> (i32, i32) {
    %c0_i32 = arith.constant 0 : i32
    %c0_i32_0 = arith.constant 0 : i32
    return %c0_i32, %arg0 : i32, i32
  }
  func.func @transform_10(%arg0: i32) -> (i32, i32) {
    %c0_i32 = arith.constant 0 : i32
    %c0_i32_0 = arith.constant 0 : i32
    return %c0_i32, %arg0 : i32, i32
  }
  func.func @transform_11(%arg0: i32) -> (i32, i32) {
    %c0_i32 = arith.constant 0 : i32
    %c0_i32_0 = arith.constant 0 : i32
    %c0_i32_1 = arith.constant 0 : i32
    return %c0_i32, %c0_i32_0 : i32, i32
  }
  func.func @transform_12(%arg0: i32) -> (i32, i32) {
    %c0_i32 = arith.constant 0 : i32
    %c0_i32_0 = arith.constant 0 : i32
    %c0_i32_1 = arith.constant 0 : i32
    return %c0_i32, %c0_i32_0 : i32, i32
  }
  func.func @transform_13(%arg0: i32) -> (i32, i32) {
    %c0_i32 = arith.constant 0 : i32
    %c0_i32_0 = arith.constant 0 : i32
    %c0_i32_1 = arith.constant 0 : i32
    return %c0_i32, %c0_i32_0 : i32, i32
  }
}

</mosaic_0001>

<llo_original>
// kernel: _vae_forward_jit.1
$region0: #{_vae_forward_jit.1}
  #allocation0 [shape = 'u32[]', space=smem, size = 0x4, offset = 0x4, fixed_abs, tag = 'smem constant byte address 0x4 - core index']
  #allocation1 [shape = 'u32[144,128]{1,0:T(1,128)}', space=vmem, size = 0x12000, scoped, tag = 'internal scratch']
  #allocation2 [shape = 'bf16[8,256]{1,0:T(8,128)(2,1)}', space=vmem, size = 0x1000, scoped, tag = 'scratch operand']
  #allocation3 [shape = 'f32[8,1]{1,0:T(8,128)}', space=vmem, size = 0x1000, scoped, tag = 'scratch operand']
  #allocation4 [shape = 'f32[8,1]{1,0:T(8,128)}', space=vmem, size = 0x1000, scoped, tag = 'scratch operand']
  %s0 = inlined_call_operand.vmem [shape: f32[8,1024], index: 0, kind: input, shape index: {}]
  %s1 = inlined_call_operand.vmem [shape: f32[8,128], index: 1, kind: input, shape index: {}]
  %s2 = inlined_call_operand.hbm [shape: bf16[1024,256], index: 2, kind: input, shape index: {}]
  %s3 = inlined_call_operand.vmem [shape: f32[1,256], index: 3, kind: input, shape index: {}]
  %s4 = inlined_call_operand.vmem [shape: bf16[256,256], index: 4, kind: input, shape index: {}]
  %s5 = inlined_call_operand.vmem [shape: f32[1,256], index: 5, kind: input, shape index: {}]
  %s6 = inlined_call_operand.vmem [shape: bf16[128,256], index: 6, kind: input, shape index: {}]
  %s7 = inlined_call_operand.vmem [shape: f32[1,256], index: 7, kind: input, shape index: {}]
  %s8 = inlined_call_operand.hbm [shape: bf16[256,1024], index: 8, kind: input, shape index: {}]
  %s9 = inlined_call_operand.vmem [shape: f32[1,1024], index: 9, kind: input, shape index: {}]
  %s10 = inlined_call_operand.vmem [shape: f32[8,1024], index: 10, kind: output, shape index: {0}]
  %s11 = inlined_call_operand.hbm [shape: f32[8,128], index: 11, kind: output, shape index: {1}]
  %s12 = inlined_call_operand.hbm [shape: f32[8,128], index: 12, kind: output, shape index: {2}]
  %s13 = inlined_call_operand.vmem [shape: f32[1,3], index: 13, kind: output, shape index: {3}]
  %14 = xla_tuple %s10, %s11, %s12, %s13
  %s15 = sld [smem:[#allocation0]]
  $region90: #{_vae_forward_jit.1} parent=0
    _
  %s17 = ssub.s32 1, %s15
  %s18 = scalar_select 0, %s17, %s15
  $region1: #{_vae_forward_jit.1} parent=0
    #allocation5 [shape = 'u8[524288]{0}', space=vmem, size = 0x80000, scoped, tag = 'input window, operand 2, single buffered']
    #allocation6 [shape = 's32[1]{0}', space=sflag, size = 0x4, scoped, tag = 'scoped memory for _vae_forward_jit.1']
    #allocation7 [shape = 's32[1]{0}', space=sflag, size = 0x4, scoped, tag = 'scoped memory for _vae_forward_jit.1']
    #allocation8 [shape = 'u8[524288]{0}', space=vmem, size = 0x80000, scoped, tag = 'input window, operand 8, single buffered']
    #allocation9 [shape = 's32[1]{0}', space=sflag, size = 0x4, scoped, tag = 'scoped memory for _vae_forward_jit.1']
    #allocation10 [shape = 'u8[4096]{0}', space=vmem, size = 0x1000, scoped, tag = 'output window, operand 1, single buffered']
    #allocation11 [shape = 'u8[4096]{0}', space=vmem, size = 0x1000, scoped, tag = 'output window, operand 2, single buffered']
    #allocation12 [shape = 's32[1]{0}', space=sflag, size = 0x4, scoped, tag = 'scoped memory for _vae_forward_jit.1']
    %19 = vsyncpa [#allocation6], 0
    %20 = vsyncpa [#allocation9], 0
    %21 = vsyncpa [#allocation7], 0
    %22 = vsyncpa [#allocation12], 0
    // Predicated region
    $region2: #{_vae_forward_jit.1} parent=1 // pred_check
      _
    $region3: #{_vae_forward_jit.1} parent=1 // pred_check_branch
      %24 = sbr.rel (0) target = $region5
    $region4: #{_vae_forward_jit.1} parent=1 // pred_region
      _
    $region5: #{_vae_forward_jit.1} parent=1 // pred_fallthru
      _
    // Predicated region
    $region6: #{_vae_forward_jit.1} parent=1 // pred_check
      _
    $region7: #{_vae_forward_jit.1} parent=1 // pred_check_branch
      %26 = sbr.rel (0) target = $region9
    $region8: #{_vae_forward_jit.1} parent=1 // pred_region
      _
    $region9: #{_vae_forward_jit.1} parent=1 // pred_fallthru
      _
    // Predicated region
    $region10: #{_vae_forward_jit.1} parent=1 // pred_check
      _
    $region11: #{_vae_forward_jit.1} parent=1 // pred_check_branch
      %28 = sbr.rel (0) target = $region13
    $region12: #{_vae_forward_jit.1} parent=1 // pred_region
      %s30 = ssub.s32 16384, 16384
      %31 = vsyncadd [#allocation6], %s30
      %s32 = sshll.u32 [#allocation5], 4
      %s33 = int_to_ptr.vmem [resolvable:$true] %s32
      %38 = dma.hbm_to_vmem [thread:$0]  %s2, 16384, %s33, [#allocation6], 128, 128, 8
    $region13: #{_vae_forward_jit.1} parent=1 // pred_fallthru
      _
    // Predicated region
    $region14: #{_vae_forward_jit.1} parent=1 // pred_check
      _
    $region15: #{_vae_forward_jit.1} parent=1 // pred_check_branch
      %40 = sbr.rel (0) target = $region17
    $region16: #{_vae_forward_jit.1} parent=1 // pred_region
      _
    $region17: #{_vae_forward_jit.1} parent=1 // pred_fallthru
      _
    // Predicated region
    $region18: #{_vae_forward_jit.1} parent=1 // pred_check
      _
    $region19: #{_vae_forward_jit.1} parent=1 // pred_check_branch
      %42 = sbr.rel (0) target = $region21
    $region20: #{_vae_forward_jit.1} parent=1 // pred_region
      _
    $region21: #{_vae_forward_jit.1} parent=1 // pred_fallthru
      _
    // Predicated region
    $region22: #{_vae_forward_jit.1} parent=1 // pred_check
      _
    $region23: #{_vae_forward_jit.1} parent=1 // pred_check_branch
      %44 = sbr.rel (0) target = $region25
    $region24: #{_vae_forward_jit.1} parent=1 // pred_region
      _
    $region25: #{_vae_forward_jit.1} parent=1 // pred_fallthru
      _
    // Predicated region
    $region26: #{_vae_forward_jit.1} parent=1 // pred_check
      _
    $region27: #{_vae_forward_jit.1} parent=1 // pred_check_branch
      %46 = sbr.rel (0) target = $region29
    $region28: #{_vae_forward_jit.1} parent=1 // pred_region
      _
    $region29: #{_vae_forward_jit.1} parent=1 // pred_fallthru
      _
    // Predicated region
    $region30: #{_vae_forward_jit.1} parent=1 // pred_check
      _
    $region31: #{_vae_forward_jit.1} parent=1 // pred_check_branch
      %48 = sbr.rel (0) target = $region33
    $region32: #{_vae_forward_jit.1} parent=1 // pred_region
      _
    $region33: #{_vae_forward_jit.1} parent=1 // pred_fallthru
      _
    // Predicated region
    $region34: #{_vae_forward_jit.1} parent=1 // pred_check
      _
    $region35: #{_vae_forward_jit.1} parent=1 // pred_check_branch
      %50 = sbr.rel (0) target = $region37
    $region36: #{_vae_forward_jit.1} parent=1 // pred_region
      %s52 = ssub.s32 16384, 16384
      %53 = vsyncadd [#allocation9], %s52
      %s54 = sshll.u32 [#allocation8], 4
      %s55 = int_to_ptr.vmem [resolvable:$true] %s54
      %60 = dma.hbm_to_vmem [thread:$0]  %s8, 16384, %s55, [#allocation9], 512, 512, 32
    $region37: #{_vae_forward_jit.1} parent=1 // pred_fallthru
      _
    // Predicated region
    $region38: #{_vae_forward_jit.1} parent=1 // pred_check
      _
    $region39: #{_vae_forward_jit.1} parent=1 // pred_check_branch
      %62 = sbr.rel (0) target = $region41
    $region40: #{_vae_forward_jit.1} parent=1 // pred_region
      _
    $region41: #{_vae_forward_jit.1} parent=1 // pred_fallthru
      _
    // Predicated region
    $region42: #{_vae_forward_jit.1} parent=1 // pred_check
      _
    $region43: #{_vae_forward_jit.1} parent=1 // pred_check_branch
      %64 = sbr.rel (0) target = $region45
    $region44: #{_vae_forward_jit.1} parent=1 // pred_region
      %65 = dma.done [#allocation6], 16384
    $region45: #{_vae_forward_jit.1} parent=1 // pred_fallthru
      _
    // Predicated region
    $region46: #{_vae_forward_jit.1} parent=1 // pred_check
      _
    $region47: #{_vae_forward_jit.1} parent=1 // pred_check_branch
      %67 = sbr.rel (0) target = $region49
    $region48: #{_vae_forward_jit.1} parent=1 // pred_region
      %68 = dma.done [#allocation9], 16384
    $region49: #{_vae_forward_jit.1} parent=1 // pred_fallthru
      _
    %p70 = scmp.eq.s32.totalorder 0, 0
    // Predicated region
    $region50: #{_vae_forward_jit.1} parent=1 // pred_check
      %p71 = pneg %p70
    $region51: #{_vae_forward_jit.1} parent=1 // pred_check_branch
      %73 = sbr.rel (%p71) target = $region53
    $region52: #{_vae_forward_jit.1} parent=1 // pred_region
      %v74 = vld [vmem:[%s0] sm:$0xff]
      %v75 = vld [vmem:[%s0 + $0x8] sm:$0xff]
      %v76 = vld [vmem:[%s0 + $0x10] sm:$0xff]
      %v77 = vld [vmem:[%s0 + $0x18] sm:$0xff]
      %v78 = vld [vmem:[%s0 + $0x20] sm:$0xff]
      %v79 = vld [vmem:[%s0 + $0x28] sm:$0xff]
      %v80 = vld [vmem:[%s0 + $0x30] sm:$0xff]
      %v81 = vld [vmem:[%s0 + $0x38] sm:$0xff]
      %v82 = vpack.c.bf16 %v74, %v74
      %v83 = vpack.c.bf16 %v75, %v75
      %v84 = vpack.c.bf16 %v76, %v76
      %v85 = vpack.c.bf16 %v77, %v77
      %v86 = vpack.c.bf16 %v78, %v78
      %v87 = vpack.c.bf16 %v79, %v79
      %v88 = vpack.c.bf16 %v80, %v80
      %v89 = vpack.c.bf16 %v81, %v81
      %v90 = vld [vmem:[#allocation5] sm:$0xff]
      %v91 = vld [vmem:[#allocation5 + $0x8] sm:$0xff]
      %v92 = vld [vmem:[#allocation5 + $0x10] sm:$0xff]
      %v93 = vld [vmem:[#allocation5 + $0x18] sm:$0xff]
      %v94 = vld [vmem:[#allocation5 + $0x20] sm:$0xff]
      %v95 = vld [vmem:[#allocation5 + $0x28] sm:$0xff]
      %v96 = vld [vmem:[#allocation5 + $0x30] sm:$0xff]
      %v97 = vld [vmem:[#allocation5 + $0x38] sm:$0xff]
      %v98 = vld [vmem:[#allocation5 + $0x40] sm:$0xff]
      %v99 = vld [vmem:[#allocation5 + $0x48] sm:$0xff]
      %v100 = vld [vmem:[#allocation5 + $0x50] sm:$0xff]
      %v101 = vld [vmem:[#allocation5 + $0x58] sm:$0xff]
      %v102 = vld [vmem:[#allocation5 + $0x60] sm:$0xff]
      %v103 = vld [vmem:[#allocation5 + $0x68] sm:$0xff]
      %v104 = vld [vmem:[#allocation5 + $0x70] sm:$0xff]
      %v105 = vld [vmem:[#allocation5 + $0x78] sm:$0xff]
      %v106 = vld [vmem:[#allocation5 + $0x80] sm:$0xff]
      %v107 = vld [vmem:[#allocation5 + $0x88] sm:$0xff]
      %v108 = vld [vmem:[#allocation5 + $0x90] sm:$0xff]
      %v109 = vld [vmem:[#allocation5 + $0x98] sm:$0xff]
      %v110 = vld [vmem:[#allocation5 + $0xa0] sm:$0xff]
      %v111 = vld [vmem:[#allocation5 + $0xa8] sm:$0xff]
      %v112 = vld [vmem:[#allocation5 + $0xb0] sm:$0xff]
      %v113 = vld [vmem:[#allocation5 + $0xb8] sm:$0xff]
      %v114 = vld [vmem:[#allocation5 + $0xc0] sm:$0xff]
      %v115 = vld [vmem:[#allocation5 + $0xc8] sm:$0xff]
      %v116 = vld [vmem:[#allocation5 + $0xd0] sm:$0xff]
      %v117 = vld [vmem:[#allocation5 + $0xd8] sm:$0xff]
      %v118 = vld [vmem:[#allocation5 + $0xe0] sm:$0xff]
      %v119 = vld [vmem:[#allocation5 + $0xe8] sm:$0xff]
      %v120 = vld [vmem:[#allocation5 + $0xf0] sm:$0xff]
      %v121 = vld [vmem:[#allocation5 + $0xf8] sm:$0xff]
      %v122 = vld [vmem:[#allocation5 + $0x100] sm:$0xff]
      %v123 = vld [vmem:[#allocation5 + $0x108] sm:$0xff]
      %v124 = vld [vmem:[#allocation5 + $0x110] sm:$0xff]
      %v125 = vld [vmem:[#allocation5 + $0x118] sm:$0xff]
      %v126 = vld [vmem:[#allocation5 + $0x120] sm:$0xff]
      %v127 = vld [vmem:[#allocation5 + $0x128] sm:$0xff]
      %v128 = vld [vmem:[#allocation5 + $0x130] sm:$0xff]
      %v129 = vld [vmem:[#allocation5 + $0x138] sm:$0xff]
      %v130 = vld [vmem:[#allocation5 + $0x140] sm:$0xff]
      %v131 = vld [vmem:[#allocation5 + $0x148] sm:$0xff]
      %v132 = vld [vmem:[#allocation5 + $0x150] sm:$0xff]
      %v133 = vld [vmem:[#allocation5 + $0x158] sm:$0xff]
      %v134 = vld [vmem:[#allocation5 + $0x160] sm:$0xff]
      %v135 = vld [vmem:[#allocation5 + $0x168] sm:$0xff]
      %v136 = vld [vmem:[#allocation5 + $0x170] sm:$0xff]
      %v137 = vld [vmem:[#allocation5 + $0x178] sm:$0xff]
      %v138 = vld [vmem:[#allocation5 + $0x180] sm:$0xff]
      %v139 = vld [vmem:[#allocation5 + $0x188] sm:$0xff]
      %v140 = vld [vmem:[#allocation5 + $0x190] sm:$0xff]
      %v141 = vld [vmem:[#allocation5 + $0x198] sm:$0xff]
      %v142 = vld [vmem:[#allocation5 + $0x1a0] sm:$0xff]
      %v143 = vld [vmem:[#allocation5 + $0x1a8] sm:$0xff]
      %v144 = vld [vmem:[#allocation5 + $0x1b0] sm:$0xff]
      %v145 = vld [vmem:[#allocation5 + $0x1b8] sm:$0xff]
      %v146 = vld [vmem:[#allocation5 + $0x1c0] sm:$0xff]
      %v147 = vld [vmem:[#allocation5 + $0x1c8] sm:$0xff]
      %v148 = vld [vmem:[#allocation5 + $0x1d0] sm:$0xff]
      %v149 = vld [vmem:[#allocation5 + $0x1d8] sm:$0xff]
      %v150 = vld [vmem:[#allocation5 + $0x1e0] sm:$0xff]
      %v151 = vld [vmem:[#allocation5 + $0x1e8] sm:$0xff]
      %v152 = vld [vmem:[#allocation5 + $0x1f0] sm:$0xff]
      %v153 = vld [vmem:[#allocation5 + $0x1f8] sm:$0xff]
      %v154 = vld [vmem:[#allocation5 + $0x200] sm:$0xff]
      %v155 = vld [vmem:[#allocation5 + $0x208] sm:$0xff]
      %v156 = vld [vmem:[#allocation5 + $0x210] sm:$0xff]
      %v157 = vld [vmem:[#allocation5 + $0x218] sm:$0xff]
      %v158 = vld [vmem:[#allocation5 + $0x220] sm:$0xff]
      %v159 = vld [vmem:[#allocation5 + $0x228] sm:$0xff]
      %v160 = vld [vmem:[#allocation5 + $0x230] sm:$0xff]
      %v161 = vld [vmem:[#allocation5 + $0x238] sm:$0xff]
      %v162 = vld [vmem:[#allocation5 + $0x240] sm:$0xff]
      %v163 = vld [vmem:[#allocation5 + $0x248] sm:$0xff]
      %v164 = vld [vmem:[#allocation5 + $0x250] sm:$0xff]
      %v165 = vld [vmem:[#allocation5 + $0x258] sm:$0xff]
      %v166 = vld [vmem:[#allocation5 + $0x260] sm:$0xff]
      %v167 = vld [vmem:[#allocation5 + $0x268] sm:$0xff]
      %v168 = vld [vmem:[#allocation5 + $0x270] sm:$0xff]
      %v169 = vld [vmem:[#allocation5 + $0x278] sm:$0xff]
      %v170 = vld [vmem:[#allocation5 + $0x280] sm:$0xff]
      %v171 = vld [vmem:[#allocation5 + $0x288] sm:$0xff]
      %v172 = vld [vmem:[#allocation5 + $0x290] sm:$0xff]
      %v173 = vld [vmem:[#allocation5 + $0x298] sm:$0xff]
      %v174 = vld [vmem:[#allocation5 + $0x2a0] sm:$0xff]
      %v175 = vld [vmem:[#allocation5 + $0x2a8] sm:$0xff]
      %v176 = vld [vmem:[#allocation5 + $0x2b0] sm:$0xff]
      %v177 = vld [vmem:[#allocation5 + $0x2b8] sm:$0xff]
      %v178 = vld [vmem:[#allocation5 + $0x2c0] sm:$0xff]
      %v179 = vld [vmem:[#allocation5 + $0x2c8] sm:$0xff]
      %v180 = vld [vmem:[#allocation5 + $0x2d0] sm:$0xff]
      %v181 = vld [vmem:[#allocation5 + $0x2d8] sm:$0xff]
      %v182 = vld [vmem:[#allocation5 + $0x2e0] sm:$0xff]
      %v183 = vld [vmem:[#allocation5 + $0x2e8] sm:$0xff]
      %v184 = vld [vmem:[#allocation5 + $0x2f0] sm:$0xff]
      %v185 = vld [vmem:[#allocation5 + $0x2f8] sm:$0xff]
      %v186 = vld [vmem:[#allocation5 + $0x300] sm:$0xff]
      %v187 = vld [vmem:[#allocation5 + $0x308] sm:$0xff]
      %v188 = vld [vmem:[#allocation5 + $0x310] sm:$0xff]
      %v189 = vld [vmem:[#allocation5 + $0x318] sm:$0xff]
      %v190 = vld [vmem:[#allocation5 + $0x320] sm:$0xff]
      %v191 = vld [vmem:[#allocation5 + $0x328] sm:$0xff]
      %v192 = vld [vmem:[#allocation5 + $0x330] sm:$0xff]
      %v193 = vld [vmem:[#allocation5 + $0x338] sm:$0xff]
      %v194 = vld [vmem:[#allocation5 + $0x340] sm:$0xff]
      %v195 = vld [vmem:[#allocation5 + $0x348] sm:$0xff]
      %v196 = vld [vmem:[#allocation5 + $0x350] sm:$0xff]
      %v197 = vld [vmem:[#allocation5 + $0x358] sm:$0xff]
      %v198 = vld [vmem:[#allocation5 + $0x360] sm:$0xff]
      %v199 = vld [vmem:[#allocation5 + $0x368] sm:$0xff]
      %v200 = vld [vmem:[#allocation5 + $0x370] sm:$0xff]
      %v201 = vld [vmem:[#allocation5 + $0x378] sm:$0xff]
      %v202 = vld [vmem:[#allocation5 + $0x380] sm:$0xff]
      %v203 = vld [vmem:[#allocation5 + $0x388] sm:$0xff]
      %v204 = vld [vmem:[#allocation5 + $0x390] sm:$0xff]
      %v205 = vld [vmem:[#allocation5 + $0x398] sm:$0xff]
      %v206 = vld [vmem:[#allocation5 + $0x3a0] sm:$0xff]
      %v207 = vld [vmem:[#allocation5 + $0x3a8] sm:$0xff]
      %v208 = vld [vmem:[#allocation5 + $0x3b0] sm:$0xff]
      %v209 = vld [vmem:[#allocation5 + $0x3b8] sm:$0xff]
      %v210 = vld [vmem:[#allocation5 + $0x3c0] sm:$0xff]
      %v211 = vld [vmem:[#allocation5 + $0x3c8] sm:$0xff]
      %v212 = vld [vmem:[#allocation5 + $0x3d0] sm:$0xff]
      %v213 = vld [vmem:[#allocation5 + $0x3d8] sm:$0xff]
      %v214 = vld [vmem:[#allocation5 + $0x3e0] sm:$0xff]
      %v215 = vld [vmem:[#allocation5 + $0x3e8] sm:$0xff]
      %v216 = vld [vmem:[#allocation5 + $0x3f0] sm:$0xff]
      %v217 = vld [vmem:[#allocation5 + $0x3f8] sm:$0xff]
      %v218 = vld [vmem:[%s3] sm:$0x3]
      %v220 = vlaneseq
      %v221 = vshrl.u32 %v220, 7
      %v222 = vsub.s32 0, %v221
      %v223 = vrot.slane %v218, %v222
      %v224 = vlaneseq
      %v225 = vshrl.u32 %v224, 7
      %v226 = vsub.s32 1, %v225
      %v227 = vrot.slane %v218, %v226
      %v358 = vunpack.c.l.b16 %v90
      %v359 = vunpack.c.h.b16 %v90
      %v360 = vunpack.c.l.b16 %v91
      %v361 = vunpack.c.h.b16 %v91
      %v362 = vunpack.c.l.b16 %v92
      %v363 = vunpack.c.h.b16 %v92
      %v364 = vunpack.c.l.b16 %v93
      %v365 = vunpack.c.h.b16 %v93
      %v366 = vunpack.c.l.b16 %v94
      %v367 = vunpack.c.h.b16 %v94
      %v368 = vunpack.c.l.b16 %v95
      %v369 = vunpack.c.h.b16 %v95
      %v370 = vunpack.c.l.b16 %v96
      %v371 = vunpack.c.h.b16 %v96
      %v372 = vunpack.c.l.b16 %v97
      %v373 = vunpack.c.h.b16 %v97
      %v374 = vunpack.c.l.b16 %v98
      %v375 = vunpack.c.h.b16 %v98
      %v376 = vunpack.c.l.b16 %v99
      %v377 = vunpack.c.h.b16 %v99
      %v378 = vunpack.c.l.b16 %v100
      %v379 = vunpack.c.h.b16 %v100
      %v380 = vunpack.c.l.b16 %v101
      %v381 = vunpack.c.h.b16 %v101
      %v382 = vunpack.c.l.b16 %v102
      %v383 = vunpack.c.h.b16 %v102
      %v384 = vunpack.c.l.b16 %v103
      %v385 = vunpack.c.h.b16 %v103
      %v386 = vunpack.c.l.b16 %v104
      %v387 = vunpack.c.h.b16 %v104
      %v388 = vunpack.c.l.b16 %v105
      %v389 = vunpack.c.h.b16 %v105
      %v390 = vunpack.c.l.b16 %v106
      %v391 = vunpack.c.h.b16 %v106
      %v392 = vunpack.c.l.b16 %v107
      %v393 = vunpack.c.h.b16 %v107
      %v394 = vunpack.c.l.b16 %v108
      %v395 = vunpack.c.h.b16 %v108
      %v396 = vunpack.c.l.b16 %v109
      %v397 = vunpack.c.h.b16 %v109
      %v398 = vunpack.c.l.b16 %v110
      %v399 = vunpack.c.h.b16 %v110
      %v400 = vunpack.c.l.b16 %v111
      %v401 = vunpack.c.h.b16 %v111
      %v402 = vunpack.c.l.b16 %v112
      %v403 = vunpack.c.h.b16 %v112
      %v404 = vunpack.c.l.b16 %v113
      %v405 = vunpack.c.h.b16 %v113
      %v406 = vunpack.c.l.b16 %v114
      %v407 = vunpack.c.h.b16 %v114
      %v408 = vunpack.c.l.b16 %v115
      %v409 = vunpack.c.h.b16 %v115
      %v410 = vunpack.c.l.b16 %v116
      %v411 = vunpack.c.h.b16 %v116
      %v412 = vunpack.c.l.b16 %v117
      %v413 = vunpack.c.h.b16 %v117
      %v414 = vunpack.c.l.b16 %v118
      %v415 = vunpack.c.h.b16 %v118
      %v416 = vunpack.c.l.b16 %v119
      %v417 = vunpack.c.h.b16 %v119
      %v418 = vunpack.c.l.b16 %v120
      %v419 = vunpack.c.h.b16 %v120
      %v420 = vunpack.c.l.b16 %v121
      %v421 = vunpack.c.h.b16 %v121
      %v422 = vunpack.c.l.b16 %v122
      %v423 = vunpack.c.h.b16 %v122
      %v424 = vunpack.c.l.b16 %v123
      %v425 = vunpack.c.h.b16 %v123
      %v426 = vunpack.c.l.b16 %v124
      %v427 = vunpack.c.h.b16 %v124
      %v428 = vunpack.c.l.b16 %v125
      %v429 = vunpack.c.h.b16 %v125
      %v430 = vunpack.c.l.b16 %v126
      %v431 = vunpack.c.h.b16 %v126
      %v432 = vunpack.c.l.b16 %v127
      %v433 = vunpack.c.h.b16 %v127
      %v434 = vunpack.c.l.b16 %v128
      %v435 = vunpack.c.h.b16 %v128
      %v436 = vunpack.c.l.b16 %v129
      %v437 = vunpack.c.h.b16 %v129
      %v438 = vunpack.c.l.b16 %v130
      %v439 = vunpack.c.h.b16 %v130
      %v440 = vunpack.c.l.b16 %v131
      %v441 = vunpack.c.h.b16 %v131
      %v442 = vunpack.c.l.b16 %v132
      %v443 = vunpack.c.h.b16 %v132
      %v444 = vunpack.c.l.b16 %v133
      %v445 = vunpack.c.h.b16 %v133
      %v446 = vunpack.c.l.b16 %v134
      %v447 = vunpack.c.h.b16 %v134
      %v448 = vunpack.c.l.b16 %v135
      %v449 = vunpack.c.h.b16 %v135
      %v450 = vunpack.c.l.b16 %v136
      %v451 = vunpack.c.h.b16 %v136
      %v452 = vunpack.c.l.b16 %v137
      %v453 = vunpack.c.h.b16 %v137
      %v454 = vunpack.c.l.b16 %v138
      %v455 = vunpack.c.h.b16 %v138
      %v456 = vunpack.c.l.b16 %v139
      %v457 = vunpack.c.h.b16 %v139
      %v458 = vunpack.c.l.b16 %v140
      %v459 = vunpack.c.h.b16 %v140
      %v460 = vunpack.c.l.b16 %v141
      %v461 = vunpack.c.h.b16 %v141
      %v462 = vunpack.c.l.b16 %v142
      %v463 = vunpack.c.h.b16 %v142
      %v464 = vunpack.c.l.b16 %v143
      %v465 = vunpack.c.h.b16 %v143
      %v466 = vunpack.c.l.b16 %v144
      %v467 = vunpack.c.h.b16 %v144
      %v468 = vunpack.c.l.b16 %v145
      %v469 = vunpack.c.h.b16 %v145
      %v470 = vunpack.c.l.b16 %v146
      %v471 = vunpack.c.h.b16 %v146
      %v472 = vunpack.c.l.b16 %v147
      %v473 = vunpack.c.h.b16 %v147
      %v474 = vunpack.c.l.b16 %v148
      %v475 = vunpack.c.h.b16 %v148
      %v476 = vunpack.c.l.b16 %v149
      %v477 = vunpack.c.h.b16 %v149
      %v478 = vunpack.c.l.b16 %v150
      %v479 = vunpack.c.h.b16 %v150
      %v480 = vunpack.c.l.b16 %v151
      %v481 = vunpack.c.h.b16 %v151
      %v482 = vunpack.c.l.b16 %v152
      %v483 = vunpack.c.h.b16 %v152
      %v484 = vunpack.c.l.b16 %v153
      %v485 = vunpack.c.h.b16 %v153
      %v486 = vunpack.c.l.b16 %v154
      %v487 = vunpack.c.h.b16 %v154
      %v488 = vunpack.c.l.b16 %v155
      %v489 = vunpack.c.h.b16 %v155
      %v490 = vunpack.c.l.b16 %v156
      %v491 = vunpack.c.h.b16 %v156
      %v492 = vunpack.c.l.b16 %v157
      %v493 = vunpack.c.h.b16 %v157
      %v494 = vunpack.c.l.b16 %v158
      %v495 = vunpack.c.h.b16 %v158
      %v496 = vunpack.c.l.b16 %v159
      %v497 = vunpack.c.h.b16 %v159
      %v498 = vunpack.c.l.b16 %v160
      %v499 = vunpack.c.h.b16 %v160
      %v500 = vunpack.c.l.b16 %v161
      %v501 = vunpack.c.h.b16 %v161
      %v502 = vunpack.c.l.b16 %v162
      %v503 = vunpack.c.h.b16 %v162
      %v504 = vunpack.c.l.b16 %v163
      %v505 = vunpack.c.h.b16 %v163
      %v506 = vunpack.c.l.b16 %v164
      %v507 = vunpack.c.h.b16 %v164
      %v508 = vunpack.c.l.b16 %v165
      %v509 = vunpack.c.h.b16 %v165
      %v510 = vunpack.c.l.b16 %v166
      %v511 = vunpack.c.h.b16 %v166
      %v512 = vunpack.c.l.b16 %v167
      %v513 = vunpack.c.h.b16 %v167
      %v514 = vunpack.c.l.b16 %v168
      %v515 = vunpack.c.h.b16 %v168
      %v516 = vunpack.c.l.b16 %v169
      %v517 = vunpack.c.h.b16 %v169
      %v518 = vunpack.c.l.b16 %v170
      %v519 = vunpack.c.h.b16 %v170
      %v520 = vunpack.c.l.b16 %v171
      %v521 = vunpack.c.h.b16 %v171
      %v522 = vunpack.c.l.b16 %v172
      %v523 = vunpack.c.h.b16 %v172
      %v524 = vunpack.c.l.b16 %v173
      %v525 = vunpack.c.h.b16 %v173
      %v526 = vunpack.c.l.b16 %v174
      %v527 = vunpack.c.h.b16 %v174
      %v528 = vunpack.c.l.b16 %v175
      %v529 = vunpack.c.h.b16 %v175
      %v530 = vunpack.c.l.b16 %v176
      %v531 = vunpack.c.h.b16 %v176
      %v532 = vunpack.c.l.b16 %v177
      %v533 = vunpack.c.h.b16 %v177
      %v534 = vunpack.c.l.b16 %v178
      %v535 = vunpack.c.h.b16 %v178
      %v536 = vunpack.c.l.b16 %v179
      %v537 = vunpack.c.h.b16 %v179
      %v538 = vunpack.c.l.b16 %v180
      %v539 = vunpack.c.h.b16 %v180
      %v540 = vunpack.c.l.b16 %v181
      %v541 = vunpack.c.h.b16 %v181
      %v542 = vunpack.c.l.b16 %v182
      %v543 = vunpack.c.h.b16 %v182
      %v544 = vunpack.c.l.b16 %v183
      %v545 = vunpack.c.h.b16 %v183
      %v546 = vunpack.c.l.b16 %v184
      %v547 = vunpack.c.h.b16 %v184
      %v548 = vunpack.c.l.b16 %v185
      %v549 = vunpack.c.h.b16 %v185
      %v550 = vunpack.c.l.b16 %v186
      %v551 = vunpack.c.h.b16 %v186
      %v552 = vunpack.c.l.b16 %v187
      %v553 = vunpack.c.h.b16 %v187
      %v554 = vunpack.c.l.b16 %v188
      %v555 = vunpack.c.h.b16 %v188
      %v556 = vunpack.c.l.b16 %v189
      %v557 = vunpack.c.h.b16 %v189
      %v558 = vunpack.c.l.b16 %v190
      %v559 = vunpack.c.h.b16 %v190
      %v560 = vunpack.c.l.b16 %v191
      %v561 = vunpack.c.h.b16 %v191
      %v562 = vunpack.c.l.b16 %v192
      %v563 = vunpack.c.h.b16 %v192
      %v564 = vunpack.c.l.b16 %v193
      %v565 = vunpack.c.h.b16 %v193
      %v566 = vunpack.c.l.b16 %v194
      %v567 = vunpack.c.h.b16 %v194
      %v568 = vunpack.c.l.b16 %v195
      %v569 = vunpack.c.h.b16 %v195
      %v570 = vunpack.c.l.b16 %v196
      %v571 = vunpack.c.h.b16 %v196
      %v572 = vunpack.c.l.b16 %v197
      %v573 = vunpack.c.h.b16 %v197
      %v574 = vunpack.c.l.b16 %v198
      %v575 = vunpack.c.h.b16 %v198
      %v576 = vunpack.c.l.b16 %v199
      %v577 = vunpack.c.h.b16 %v199
      %v578 = vunpack.c.l.b16 %v200
      %v579 = vunpack.c.h.b16 %v200
      %v580 = vunpack.c.l.b16 %v201
      %v581 = vunpack.c.h.b16 %v201
      %v582 = vunpack.c.l.b16 %v202
      %v583 = vunpack.c.h.b16 %v202
      %v584 = vunpack.c.l.b16 %v203
      %v585 = vunpack.c.h.b16 %v203
      %v586 = vunpack.c.l.b16 %v204
      %v587 = vunpack.c.h.b16 %v204
      %v588 = vunpack.c.l.b16 %v205
      %v589 = vunpack.c.h.b16 %v205
      %v590 = vunpack.c.l.b16 %v206
      %v591 = vunpack.c.h.b16 %v206
      %v592 = vunpack.c.l.b16 %v207
      %v593 = vunpack.c.h.b16 %v207
      %v594 = vunpack.c.l.b16 %v208
      %v595 = vunpack.c.h.b16 %v208
      %v596 = vunpack.c.l.b16 %v209
      %v597 = vunpack.c.h.b16 %v209
      %v598 = vunpack.c.l.b16 %v210
      %v599 = vunpack.c.h.b16 %v210
      %v600 = vunpack.c.l.b16 %v211
      %v601 = vunpack.c.h.b16 %v211
      %v602 = vunpack.c.l.b16 %v212
      %v603 = vunpack.c.h.b16 %v212
      %v604 = vunpack.c.l.b16 %v213
      %v605 = vunpack.c.h.b16 %v213
      %v606 = vunpack.c.l.b16 %v214
      %v607 = vunpack.c.h.b16 %v214
      %v608 = vunpack.c.l.b16 %v215
      %v609 = vunpack.c.h.b16 %v215
      %v610 = vunpack.c.l.b16 %v216
      %v611 = vunpack.c.h.b16 %v216
      %v612 = vunpack.c.l.b16 %v217
      %v613 = vunpack.c.h.b16 %v217
      %v614 = vpack.c.b16 %v360, %v358
      %v615 = vpack.c.b16 %v361, %v359
      %v616 = vpack.c.b16 %v364, %v362
      %v617 = vpack.c.b16 %v365, %v363
      %v618 = vpack.c.b16 %v368, %v366
      %v619 = vpack.c.b16 %v369, %v367
      %v620 = vpack.c.b16 %v372, %v370
      %v621 = vpack.c.b16 %v373, %v371
      %v622 = vpack.c.b16 %v376, %v374
      %v623 = vpack.c.b16 %v377, %v375
      %v624 = vpack.c.b16 %v380, %v378
      %v625 = vpack.c.b16 %v381, %v379
      %v626 = vpack.c.b16 %v384, %v382
      %v627 = vpack.c.b16 %v385, %v383
      %v628 = vpack.c.b16 %v388, %v386
      %v629 = vpack.c.b16 %v389, %v387
      %v630 = vpack.c.b16 %v392, %v390
      %v631 = vpack.c.b16 %v393, %v391
      %v632 = vpack.c.b16 %v396, %v394
      %v633 = vpack.c.b16 %v397, %v395
      %v634 = vpack.c.b16 %v400, %v398
      %v635 = vpack.c.b16 %v401, %v399
      %v636 = vpack.c.b16 %v404, %v402
      %v637 = vpack.c.b16 %v405, %v403
      %v638 = vpack.c.b16 %v408, %v406
      %v639 = vpack.c.b16 %v409, %v407
      %v640 = vpack.c.b16 %v412, %v410
      %v641 = vpack.c.b16 %v413, %v411
      %v642 = vpack.c.b16 %v416, %v414
      %v643 = vpack.c.b16 %v417, %v415
      %v644 = vpack.c.b16 %v420, %v418
      %v645 = vpack.c.b16 %v421, %v419
      %v646 = vpack.c.b16 %v424, %v422
      %v647 = vpack.c.b16 %v425, %v423
      %v648 = vpack.c.b16 %v428, %v426
      %v649 = vpack.c.b16 %v429, %v427
      %v650 = vpack.c.b16 %v432, %v430
      %v651 = vpack.c.b16 %v433, %v431
      %v652 = vpack.c.b16 %v436, %v434
      %v653 = vpack.c.b16 %v437, %v435
      %v654 = vpack.c.b16 %v440, %v438
      %v655 = vpack.c.b16 %v441, %v439
      %v656 = vpack.c.b16 %v444, %v442
      %v657 = vpack.c.b16 %v445, %v443
      %v658 = vpack.c.b16 %v448, %v446
      %v659 = vpack.c.b16 %v449, %v447
      %v660 = vpack.c.b16 %v452, %v450
      %v661 = vpack.c.b16 %v453, %v451
      %v662 = vpack.c.b16 %v456, %v454
      %v663 = vpack.c.b16 %v457, %v455
      %v664 = vpack.c.b16 %v460, %v458
      %v665 = vpack.c.b16 %v461, %v459
      %v666 = vpack.c.b16 %v464, %v462
      %v667 = vpack.c.b16 %v465, %v463
      %v668 = vpack.c.b16 %v468, %v466
      %v669 = vpack.c.b16 %v469, %v467
      %v670 = vpack.c.b16 %v472, %v470
      %v671 = vpack.c.b16 %v473, %v471
      %v672 = vpack.c.b16 %v476, %v474
      %v673 = vpack.c.b16 %v477, %v475
      %v674 = vpack.c.b16 %v480, %v478
      %v675 = vpack.c.b16 %v481, %v479
      %v676 = vpack.c.b16 %v484, %v482
      %v677 = vpack.c.b16 %v485, %v483
      %v678 = vpack.c.b16 %v488, %v486
      %v679 = vpack.c.b16 %v489, %v487
      %v680 = vpack.c.b16 %v492, %v490
      %v681 = vpack.c.b16 %v493, %v491
      %v682 = vpack.c.b16 %v496, %v494
      %v683 = vpack.c.b16 %v497, %v495
      %v684 = vpack.c.b16 %v500, %v498
      %v685 = vpack.c.b16 %v501, %v499
      %v686 = vpack.c.b16 %v504, %v502
      %v687 = vpack.c.b16 %v505, %v503
      %v688 = vpack.c.b16 %v508, %v506
      %v689 = vpack.c.b16 %v509, %v507
      %v690 = vpack.c.b16 %v512, %v510
      %v691 = vpack.c.b16 %v513, %v511
      %v692 = vpack.c.b16 %v516, %v514
      %v693 = vpack.c.b16 %v517, %v515
      %v694 = vpack.c.b16 %v520, %v518
      %v695 = vpack.c.b16 %v521, %v519
      %v696 = vpack.c.b16 %v524, %v522
      %v697 = vpack.c.b16 %v525, %v523
      %v698 = vpack.c.b16 %v528, %v526
      %v699 = vpack.c.b16 %v529, %v527
      %v700 = vpack.c.b16 %v532, %v530
      %v701 = vpack.c.b16 %v533, %v531
      %v702 = vpack.c.b16 %v536, %v534
      %v703 = vpack.c.b16 %v537, %v535
      %v704 = vpack.c.b16 %v540, %v538
      %v705 = vpack.c.b16 %v541, %v539
      %v706 = vpack.c.b16 %v544, %v542
      %v707 = vpack.c.b16 %v545, %v543
      %v708 = vpack.c.b16 %v548, %v546
      %v709 = vpack.c.b16 %v549, %v547
      %v710 = vpack.c.b16 %v552, %v550
      %v711 = vpack.c.b16 %v553, %v551
      %v712 = vpack.c.b16 %v556, %v554
      %v713 = vpack.c.b16 %v557, %v555
      %v714 = vpack.c.b16 %v560, %v558
      %v715 = vpack.c.b16 %v561, %v559
      %v716 = vpack.c.b16 %v564, %v562
      %v717 = vpack.c.b16 %v565, %v563
      %v718 = vpack.c.b16 %v568, %v566
      %v719 = vpack.c.b16 %v569, %v567
      %v720 = vpack.c.b16 %v572, %v570
      %v721 = vpack.c.b16 %v573, %v571
      %v722 = vpack.c.b16 %v576, %v574
      %v723 = vpack.c.b16 %v577, %v575
      %v724 = vpack.c.b16 %v580, %v578
      %v725 = vpack.c.b16 %v581, %v579
      %v726 = vpack.c.b16 %v584, %v582
      %v727 = vpack.c.b16 %v585, %v583
      %v728 = vpack.c.b16 %v588, %v586
      %v729 = vpack.c.b16 %v589, %v587
      %v730 = vpack.c.b16 %v592, %v590
      %v731 = vpack.c.b16 %v593, %v591
      %v732 = vpack.c.b16 %v596, %v594
      %v733 = vpack.c.b16 %v597, %v595
      %v734 = vpack.c.b16 %v600, %v598
      %v735 = vpack.c.b16 %v601, %v599
      %v736 = vpack.c.b16 %v604, %v602
      %v737 = vpack.c.b16 %v605, %v603
      %v738 = vpack.c.b16 %v608, %v606
      %v739 = vpack.c.b16 %v609, %v607
      %v740 = vpack.c.b16 %v612, %v610
      %v741 = vpack.c.b16 %v613, %v611
      %870 = vmatprep.subr.bf16.mxu0 %v629
      %871 = vmatpush1.bf16.msra.mxu0 %v628
      %872 = vmatprep.subr.bf16.mxu0 %v627
      %873 = vmatpush1.bf16.msra.mxu0 %v626
      %874 = vmatprep.subr.bf16.mxu0 %v625
      %875 = vmatpush1.bf16.msra.mxu0 %v624
      %876 = vmatprep.subr.bf16.mxu0 %v623
      %877 = vmatpush1.bf16.msra.mxu0 %v622
      %878 = vmatprep.subr.bf16.mxu0 %v621
      %879 = vmatpush1.bf16.msra.mxu0 %v620
      %880 = vmatprep.subr.bf16.mxu0 %v619
      %881 = vmatpush1.bf16.msra.mxu0 %v618
      %882 = vmatprep.subr.bf16.mxu0 %v617
      %883 = vmatpush1.bf16.msra.mxu0 %v616
      %884 = vmatprep.subr.bf16.mxu0 %v615
      %885 = vmatpush1.bf16.msra.mxu0 %v614
      %886 = vmatprep.subr.bf16.mxu0 %v645
      %887 = vmatpush2.bf16.msra.mxu0 %v644
      %888 = vmatprep.subr.bf16.mxu0 %v643
      %889 = vmatpush2.bf16.msra.mxu0 %v642
      %890 = vmatprep.subr.bf16.mxu0 %v641
      %891 = vmatpush2.bf16.msra.mxu0 %v640
      %892 = vmatprep.subr.bf16.mxu0 %v639
      %893 = vmatpush2.bf16.msra.mxu0 %v638
      %894 = vmatprep.subr.bf16.mxu0 %v637
      %895 = vmatpush2.bf16.msra.mxu0 %v636
      %896 = vmatprep.subr.bf16.mxu0 %v635
      %897 = vmatpush2.bf16.msra.mxu0 %v634
      %898 = vmatprep.subr.bf16.mxu0 %v633
      %899 = vmatpush2.bf16.msra.mxu0 %v632
      %900 = vmatprep.subr.bf16.mxu0 %v631
      %901 = vmatpush2.bf16.msra.mxu0 %v630
      %902 = vmatprep.mubr.bf16.mxu0 %v83
      %903 = vmatmul.mubr.bf16.gmra.mxu0 %v82
      %v904 = vpop.f32.mrf.mxu0
      %v905 = vadd.f32 %v223, %v904
      %v906 = vpop.f32.mrf.mxu0
      %v907 = vadd.f32 %v227, %v906
      %v908 = vpop.f32.mrf.mxu0
      %v909 = vpop.f32.mrf.mxu0
      %910 = vdwg.mxu0
      %911 = vmatprep.subr.bf16.mxu0 %v661
      %912 = vmatpush1.bf16.msra.mxu0 %v660
      %913 = vmatprep.subr.bf16.mxu0 %v659
      %914 = vmatpush1.bf16.msra.mxu0 %v658
      %915 = vmatprep.subr.bf16.mxu0 %v657
      %916 = vmatpush1.bf16.msra.mxu0 %v656
      %917 = vmatprep.subr.bf16.mxu0 %v655
      %918 = vmatpush1.bf16.msra.mxu0 %v654
      %919 = vmatprep.subr.bf16.mxu0 %v653
      %920 = vmatpush1.bf16.msra.mxu0 %v652
      %921 = vmatprep.subr.bf16.mxu0 %v651
      %922 = vmatpush1.bf16.msra.mxu0 %v650
      %923 = vmatprep.subr.bf16.mxu0 %v649
      %924 = vmatpush1.bf16.msra.mxu0 %v648
      %925 = vmatprep.subr.bf16.mxu0 %v647
      %926 = vmatpush1.bf16.msra.mxu0 %v646
      %927 = vmatprep.subr.bf16.mxu0 %v677
      %928 = vmatpush2.bf16.msra.mxu0 %v676
      %929 = vmatprep.subr.bf16.mxu0 %v675
      %930 = vmatpush2.bf16.msra.mxu0 %v674
      %931 = vmatprep.subr.bf16.mxu0 %v673
      %932 = vmatpush2.bf16.msra.mxu0 %v672
      %933 = vmatprep.subr.bf16.mxu0 %v671
      %934 = vmatpush2.bf16.msra.mxu0 %v670
      %935 = vmatprep.subr.bf16.mxu0 %v669
      %936 = vmatpush2.bf16.msra.mxu0 %v668
      %937 = vmatprep.subr.bf16.mxu0 %v667
      %938 = vmatpush2.bf16.msra.mxu0 %v666
      %939 = vmatprep.subr.bf16.mxu0 %v665
      %940 = vmatpush2.bf16.msra.mxu0 %v664
      %941 = vmatprep.subr.bf16.mxu0 %v663
      %942 = vmatpush2.bf16.msra.mxu0 %v662
      %943 = vmatprep.mubr.bf16.mxu0 %v85
      %944 = vmatmul.mubr.bf16.gmra.mxu0 %v84
      %v945 = vpop.f32.mrf.mxu0
      %v946 = vadd.f32 %v905, %v945
      %v947 = vpop.f32.mrf.mxu0
      %v948 = vadd.f32 %v907, %v947
      %v949 = vpop.f32.mrf.mxu0
      %v950 = vpop.f32.mrf.mxu0
      %951 = vdwg.mxu0
      %952 = vmatprep.subr.bf16.mxu0 %v693
      %953 = vmatpush1.bf16.msra.mxu0 %v692
      %954 = vmatprep.subr.bf16.mxu0 %v691
      %955 = vmatpush1.bf16.msra.mxu0 %v690
      %956 = vmatprep.subr.bf16.mxu0 %v689
      %957 = vmatpush1.bf16.msra.mxu0 %v688
      %958 = vmatprep.subr.bf16.mxu0 %v687
      %959 = vmatpush1.bf16.msra.mxu0 %v686
      %960 = vmatprep.subr.bf16.mxu0 %v685
      %961 = vmatpush1.bf16.msra.mxu0 %v684
      %962 = vmatprep.subr.bf16.mxu0 %v683
      %963 = vmatpush1.bf16.msra.mxu0 %v682
      %964 = vmatprep.subr.bf16.mxu0 %v681
      %965 = vmatpush1.bf16.msra.mxu0 %v680
      %966 = vmatprep.subr.bf16.mxu0 %v679
      %967 = vmatpush1.bf16.msra.mxu0 %v678
      %968 = vmatprep.subr.bf16.mxu0 %v709
      %969 = vmatpush2.bf16.msra.mxu0 %v708
      %970 = vmatprep.subr.bf16.mxu0 %v707
      %971 = vmatpush2.bf16.msra.mxu0 %v706
      %972 = vmatprep.subr.bf16.mxu0 %v705
      %973 = vmatpush2.bf16.msra.mxu0 %v704
      %974 = vmatprep.subr.bf16.mxu0 %v703
      %975 = vmatpush2.bf16.msra.mxu0 %v702
      %976 = vmatprep.subr.bf16.mxu0 %v701
      %977 = vmatpush2.bf16.msra.mxu0 %v700
      %978 = vmatprep.subr.bf16.mxu0 %v699
      %979 = vmatpush2.bf16.msra.mxu0 %v698
      %980 = vmatprep.subr.bf16.mxu0 %v697
      %981 = vmatpush2.bf16.msra.mxu0 %v696
      %982 = vmatprep.subr.bf16.mxu0 %v695
      %983 = vmatpush2.bf16.msra.mxu0 %v694
      %984 = vmatprep.mubr.bf16.mxu0 %v87
      %985 = vmatmul.mubr.bf16.gmra.mxu0 %v86
      %v986 = vpop.f32.mrf.mxu0
      %v987 = vadd.f32 %v946, %v986
      %v988 = vpop.f32.mrf.mxu0
      %v989 = vadd.f32 %v948, %v988
      %v990 = vpop.f32.mrf.mxu0
      %v991 = vpop.f32.mrf.mxu0
      %992 = vdwg.mxu0
      %993 = vmatprep.subr.bf16.mxu0 %v725
      %994 = vmatpush1.bf16.msra.mxu0 %v724
      %995 = vmatprep.subr.bf16.mxu0 %v723
      %996 = vmatpush1.bf16.msra.mxu0 %v722
      %997 = vmatprep.subr.bf16.mxu0 %v721
      %998 = vmatpush1.bf16.msra.mxu0 %v720
      %999 = vmatprep.subr.bf16.mxu0 %v719
      %1000 = vmatpush1.bf16.msra.mxu0 %v718
      %1001 = vmatprep.subr.bf16.mxu0 %v717
      %1002 = vmatpush1.bf16.msra.mxu0 %v716
      %1003 = vmatprep.subr.bf16.mxu0 %v715
      %1004 = vmatpush1.bf16.msra.mxu0 %v714
      %1005 = vmatprep.subr.bf16.mxu0 %v713
      %1006 = vmatpush1.bf16.msra.mxu0 %v712
      %1007 = vmatprep.subr.bf16.mxu0 %v711
      %1008 = vmatpush1.bf16.msra.mxu0 %v710
      %1009 = vmatprep.subr.bf16.mxu0 %v741
      %1010 = vmatpush2.bf16.msra.mxu0 %v740
      %1011 = vmatprep.subr.bf16.mxu0 %v739
      %1012 = vmatpush2.bf16.msra.mxu0 %v738
      %1013 = vmatprep.subr.bf16.mxu0 %v737
      %1014 = vmatpush2.bf16.msra.mxu0 %v736
      %1015 = vmatprep.subr.bf16.mxu0 %v735
      %1016 = vmatpush2.bf16.msra.mxu0 %v734
      %1017 = vmatprep.subr.bf16.mxu0 %v733
      %1018 = vmatpush2.bf16.msra.mxu0 %v732
      %1019 = vmatprep.subr.bf16.mxu0 %v731
      %1020 = vmatpush2.bf16.msra.mxu0 %v730
      %1021 = vmatprep.subr.bf16.mxu0 %v729
      %1022 = vmatpush2.bf16.msra.mxu0 %v728
      %1023 = vmatprep.subr.bf16.mxu0 %v727
      %1024 = vmatpush2.bf16.msra.mxu0 %v726
      %1025 = vmatprep.mubr.bf16.mxu0 %v89
      %1026 = vmatmul.mubr.bf16.gmra.mxu0 %v88
      %v1027 = vpop.f32.mrf.mxu0
      %v1028 = vadd.f32 %v987, %v1027
      %v1029 = vpop.f32.mrf.mxu0
      %v1030 = vadd.f32 %v989, %v1029
      %v1031 = vpop.f32.mrf.mxu0
      %v1032 = vpop.f32.mrf.mxu0
      %1033 = vdwg.mxu0
      %v1034 = vmax.f32 %v1028, 0.0
      %v1035 = vmax.f32 %v1030, 0.0
      %v1036 = vpack.c.bf16 %v1034, %v1034
      %v1037 = vpack.c.bf16 %v1035, %v1035
      %v1038 = vld [vmem:[%s4] sm:$0xff]
      %v1039 = vld [vmem:[%s4 + $0x8] sm:$0xff]
      %v1040 = vld [vmem:[%s4 + $0x10] sm:$0xff]
      %v1041 = vld [vmem:[%s4 + $0x18] sm:$0xff]
      %v1042 = vld [vmem:[%s4 + $0x20] sm:$0xff]
      %v1043 = vld [vmem:[%s4 + $0x28] sm:$0xff]
      %v1044 = vld [vmem:[%s4 + $0x30] sm:$0xff]
      %v1045 = vld [vmem:[%s4 + $0x38] sm:$0xff]
      %v1046 = vld [vmem:[%s4 + $0x40] sm:$0xff]
      %v1047 = vld [vmem:[%s4 + $0x48] sm:$0xff]
      %v1048 = vld [vmem:[%s4 + $0x50] sm:$0xff]
      %v1049 = vld [vmem:[%s4 + $0x58] sm:$0xff]
      %v1050 = vld [vmem:[%s4 + $0x60] sm:$0xff]
      %v1051 = vld [vmem:[%s4 + $0x68] sm:$0xff]
      %v1052 = vld [vmem:[%s4 + $0x70] sm:$0xff]
      %v1053 = vld [vmem:[%s4 + $0x78] sm:$0xff]
      %v1054 = vld [vmem:[%s4 + $0x80] sm:$0xff]
      %v1055 = vld [vmem:[%s4 + $0x88] sm:$0xff]
      %v1056 = vld [vmem:[%s4 + $0x90] sm:$0xff]
      %v1057 = vld [vmem:[%s4 + $0x98] sm:$0xff]
      %v1058 = vld [vmem:[%s4 + $0xa0] sm:$0xff]
      %v1059 = vld [vmem:[%s4 + $0xa8] sm:$0xff]
      %v1060 = vld [vmem:[%s4 + $0xb0] sm:$0xff]
      %v1061 = vld [vmem:[%s4 + $0xb8] sm:$0xff]
      %v1062 = vld [vmem:[%s4 + $0xc0] sm:$0xff]
      %v1063 = vld [vmem:[%s4 + $0xc8] sm:$0xff]
      %v1064 = vld [vmem:[%s4 + $0xd0] sm:$0xff]
      %v1065 = vld [vmem:[%s4 + $0xd8] sm:$0xff]
      %v1066 = vld [vmem:[%s4 + $0xe0] sm:$0xff]
      %v1067 = vld [vmem:[%s4 + $0xe8] sm:$0xff]
      %v1068 = vld [vmem:[%s4 + $0xf0] sm:$0xff]
      %v1069 = vld [vmem:[%s4 + $0xf8] sm:$0xff]
      %v1070 = vld [vmem:[%s5] sm:$0x3]
      %v1072 = vlaneseq
      %v1073 = vshrl.u32 %v1072, 7
      %v1074 = vsub.s32 0, %v1073
      %v1075 = vrot.slane %v1070, %v1074
      %v1076 = vlaneseq
      %v1077 = vshrl.u32 %v1076, 7
      %v1078 = vsub.s32 1, %v1077
      %v1079 = vrot.slane %v1070, %v1078
      %v1114 = vunpack.c.l.b16 %v1038
      %v1115 = vunpack.c.h.b16 %v1038
      %v1116 = vunpack.c.l.b16 %v1039
      %v1117 = vunpack.c.h.b16 %v1039
      %v1118 = vunpack.c.l.b16 %v1040
      %v1119 = vunpack.c.h.b16 %v1040
      %v1120 = vunpack.c.l.b16 %v1041
      %v1121 = vunpack.c.h.b16 %v1041
      %v1122 = vunpack.c.l.b16 %v1042
      %v1123 = vunpack.c.h.b16 %v1042
      %v1124 = vunpack.c.l.b16 %v1043
      %v1125 = vunpack.c.h.b16 %v1043
      %v1126 = vunpack.c.l.b16 %v1044
      %v1127 = vunpack.c.h.b16 %v1044
      %v1128 = vunpack.c.l.b16 %v1045
      %v1129 = vunpack.c.h.b16 %v1045
      %v1130 = vunpack.c.l.b16 %v1046
      %v1131 = vunpack.c.h.b16 %v1046
      %v1132 = vunpack.c.l.b16 %v1047
      %v1133 = vunpack.c.h.b16 %v1047
      %v1134 = vunpack.c.l.b16 %v1048
      %v1135 = vunpack.c.h.b16 %v1048
      %v1136 = vunpack.c.l.b16 %v1049
      %v1137 = vunpack.c.h.b16 %v1049
      %v1138 = vunpack.c.l.b16 %v1050
      %v1139 = vunpack.c.h.b16 %v1050
      %v1140 = vunpack.c.l.b16 %v1051
      %v1141 = vunpack.c.h.b16 %v1051
      %v1142 = vunpack.c.l.b16 %v1052
      %v1143 = vunpack.c.h.b16 %v1052
      %v1144 = vunpack.c.l.b16 %v1053
      %v1145 = vunpack.c.h.b16 %v1053
      %v1146 = vunpack.c.l.b16 %v1054
      %v1147 = vunpack.c.h.b16 %v1054
      %v1148 = vunpack.c.l.b16 %v1055
      %v1149 = vunpack.c.h.b16 %v1055
      %v1150 = vunpack.c.l.b16 %v1056
      %v1151 = vunpack.c.h.b16 %v1056
      %v1152 = vunpack.c.l.b16 %v1057
      %v1153 = vunpack.c.h.b16 %v1057
      %v1154 = vunpack.c.l.b16 %v1058
      %v1155 = vunpack.c.h.b16 %v1058
      %v1156 = vunpack.c.l.b16 %v1059
      %v1157 = vunpack.c.h.b16 %v1059
      %v1158 = vunpack.c.l.b16 %v1060
      %v1159 = vunpack.c.h.b16 %v1060
      %v1160 = vunpack.c.l.b16 %v1061
      %v1161 = vunpack.c.h.b16 %v1061
      %v1162 = vunpack.c.l.b16 %v1062
      %v1163 = vunpack.c.h.b16 %v1062
      %v1164 = vunpack.c.l.b16 %v1063
      %v1165 = vunpack.c.h.b16 %v1063
      %v1166 = vunpack.c.l.b16 %v1064
      %v1167 = vunpack.c.h.b16 %v1064
      %v1168 = vunpack.c.l.b16 %v1065
      %v1169 = vunpack.c.h.b16 %v1065
      %v1170 = vunpack.c.l.b16 %v1066
      %v1171 = vunpack.c.h.b16 %v1066
      %v1172 = vunpack.c.l.b16 %v1067
      %v1173 = vunpack.c.h.b16 %v1067
      %v1174 = vunpack.c.l.b16 %v1068
      %v1175 = vunpack.c.h.b16 %v1068
      %v1176 = vunpack.c.l.b16 %v1069
      %v1177 = vunpack.c.h.b16 %v1069
      %v1178 = vpack.c.b16 %v1116, %v1114
      %v1179 = vpack.c.b16 %v1117, %v1115
      %v1180 = vpack.c.b16 %v1120, %v1118
      %v1181 = vpack.c.b16 %v1121, %v1119
      %v1182 = vpack.c.b16 %v1124, %v1122
      %v1183 = vpack.c.b16 %v1125, %v1123
      %v1184 = vpack.c.b16 %v1128, %v1126
      %v1185 = vpack.c.b16 %v1129, %v1127
      %v1186 = vpack.c.b16 %v1132, %v1130
      %v1187 = vpack.c.b16 %v1133, %v1131
      %v1188 = vpack.c.b16 %v1136, %v1134
      %v1189 = vpack.c.b16 %v1137, %v1135
      %v1190 = vpack.c.b16 %v1140, %v1138
      %v1191 = vpack.c.b16 %v1141, %v1139
      %v1192 = vpack.c.b16 %v1144, %v1142
      %v1193 = vpack.c.b16 %v1145, %v1143
      %v1194 = vpack.c.b16 %v1148, %v1146
      %v1195 = vpack.c.b16 %v1149, %v1147
      %v1196 = vpack.c.b16 %v1152, %v1150
      %v1197 = vpack.c.b16 %v1153, %v1151
      %v1198 = vpack.c.b16 %v1156, %v1154
      %v1199 = vpack.c.b16 %v1157, %v1155
      %v1200 = vpack.c.b16 %v1160, %v1158
      %v1201 = vpack.c.b16 %v1161, %v1159
      %v1202 = vpack.c.b16 %v1164, %v1162
      %v1203 = vpack.c.b16 %v1165, %v1163
      %v1204 = vpack.c.b16 %v1168, %v1166
      %v1205 = vpack.c.b16 %v1169, %v1167
      %v1206 = vpack.c.b16 %v1172, %v1170
      %v1207 = vpack.c.b16 %v1173, %v1171
      %v1208 = vpack.c.b16 %v1176, %v1174
      %v1209 = vpack.c.b16 %v1177, %v1175
      %1242 = vmatprep.subr.bf16.mxu0 %v1193
      %1243 = vmatpush1.bf16.msra.mxu0 %v1192
      %1244 = vmatprep.subr.bf16.mxu0 %v1191
      %1245 = vmatpush1.bf16.msra.mxu0 %v1190
      %1246 = vmatprep.subr.bf16.mxu0 %v1189
      %1247 = vmatpush1.bf16.msra.mxu0 %v1188
      %1248 = vmatprep.subr.bf16.mxu0 %v1187
      %1249 = vmatpush1.bf16.msra.mxu0 %v1186
      %1250 = vmatprep.subr.bf16.mxu0 %v1185
      %1251 = vmatpush1.bf16.msra.mxu0 %v1184
      %1252 = vmatprep.subr.bf16.mxu0 %v1183
      %1253 = vmatpush1.bf16.msra.mxu0 %v1182
      %1254 = vmatprep.subr.bf16.mxu0 %v1181
      %1255 = vmatpush1.bf16.msra.mxu0 %v1180
      %1256 = vmatprep.subr.bf16.mxu0 %v1179
      %1257 = vmatpush1.bf16.msra.mxu0 %v1178
      %1258 = vmatprep.subr.bf16.mxu0 %v1209
      %1259 = vmatpush2.bf16.msra.mxu0 %v1208
      %1260 = vmatprep.subr.bf16.mxu0 %v1207
      %1261 = vmatpush2.bf16.msra.mxu0 %v1206
      %1262 = vmatprep.subr.bf16.mxu0 %v1205
      %1263 = vmatpush2.bf16.msra.mxu0 %v1204
      %1264 = vmatprep.subr.bf16.mxu0 %v1203
      %1265 = vmatpush2.bf16.msra.mxu0 %v1202
      %1266 = vmatprep.subr.bf16.mxu0 %v1201
      %1267 = vmatpush2.bf16.msra.mxu0 %v1200
      %1268 = vmatprep.subr.bf16.mxu0 %v1199
      %1269 = vmatpush2.bf16.msra.mxu0 %v1198
      %1270 = vmatprep.subr.bf16.mxu0 %v1197
      %1271 = vmatpush2.bf16.msra.mxu0 %v1196
      %1272 = vmatprep.subr.bf16.mxu0 %v1195
      %1273 = vmatpush2.bf16.msra.mxu0 %v1194
      %1274 = vmatprep.mubr.bf16.mxu0 %v1037
      %1275 = vmatmul.mubr.bf16.gmra.mxu0 %v1036
      %v1276 = vpop.f32.mrf.mxu0
      %v1277 = vadd.f32 %v1075, %v1276
      %v1278 = vpop.f32.mrf.mxu0
      %v1279 = vadd.f32 %v1079, %v1278
      %v1280 = vpop.f32.mrf.mxu0
      %v1281 = vpop.f32.mrf.mxu0
      %1282 = vdwg.mxu0
      %1283 = vst [vmem:[#allocation10] sm:$0xff] %v1277
      %1284 = vst [vmem:[#allocation11] sm:$0xff] %v1279
      %v1285 = vmul.f32 %v1279, 2.0
      %v1286 = vmul.f32 %v1285, 1.442695
      %v1287 = vpow.pop %v1286
      %v1288 = vmul.f32 %v1277, %v1277
      %v1289 = vadd.f32 %v1287, %v1288
      %v1290 = vmul.f32 %v1289, 0.5
      %v1291 = vsub.f32 %v1290, 0.5
      %v1292 = vsub.f32 %v1291, %v1279
      %1293 = vadd.xlane.f32.xlu0 %v1292
      %v1294 = vpop.xlane.xlu0 %1293
      %v1295 = vrcp.pop 128.0
      %v1296 = vmul.f32 %v1294, %v1295
      %vm1297 = vcmask 7168
      %1298 = vst.msk [vmem:[#allocation4] sm:$0xff] %vm1297, %v1296
      %v1299 = vld [vmem:[%s1] sm:$0xff]
      %v1300 = vmul.f32 %v1279, 1.442695
      %v1301 = vpow.pop %v1300
      %v1302 = vmul.f32 %v1299, %v1301
      %v1303 = vadd.f32 %v1277, %v1302
      %v1304 = vpack.c.bf16 %v1303, %v1303
      %v1305 = vld [vmem:[%s6] sm:$0xff]
      %v1306 = vld [vmem:[%s6 + $0x8] sm:$0xff]
      %v1307 = vld [vmem:[%s6 + $0x10] sm:$0xff]
      %v1308 = vld [vmem:[%s6 + $0x18] sm:$0xff]
      %v1309 = vld [vmem:[%s6 + $0x20] sm:$0xff]
      %v1310 = vld [vmem:[%s6 + $0x28] sm:$0xff]
      %v1311 = vld [vmem:[%s6 + $0x30] sm:$0xff]
      %v1312 = vld [vmem:[%s6 + $0x38] sm:$0xff]
      %v1313 = vld [vmem:[%s6 + $0x40] sm:$0xff]
      %v1314 = vld [vmem:[%s6 + $0x48] sm:$0xff]
      %v1315 = vld [vmem:[%s6 + $0x50] sm:$0xff]
      %v1316 = vld [vmem:[%s6 + $0x58] sm:$0xff]
      %v1317 = vld [vmem:[%s6 + $0x60] sm:$0xff]
      %v1318 = vld [vmem:[%s6 + $0x68] sm:$0xff]
      %v1319 = vld [vmem:[%s6 + $0x70] sm:$0xff]
      %v1320 = vld [vmem:[%s6 + $0x78] sm:$0xff]
      %v1321 = vld [vmem:[%s7] sm:$0x3]
      %v1323 = vlaneseq
      %v1324 = vshrl.u32 %v1323, 7
      %v1325 = vsub.s32 0, %v1324
      %v1326 = vrot.slane %v1321, %v1325
      %v1327 = vlaneseq
      %v1328 = vshrl.u32 %v1327, 7
      %v1329 = vsub.s32 1, %v1328
      %v1330 = vrot.slane %v1321, %v1329
      %v1349 = vunpack.c.l.b16 %v1305
      %v1350 = vunpack.c.h.b16 %v1305
      %v1351 = vunpack.c.l.b16 %v1306
      %v1352 = vunpack.c.h.b16 %v1306
      %v1353 = vunpack.c.l.b16 %v1307
      %v1354 = vunpack.c.h.b16 %v1307
      %v1355 = vunpack.c.l.b16 %v1308
      %v1356 = vunpack.c.h.b16 %v1308
      %v1357 = vunpack.c.l.b16 %v1309
      %v1358 = vunpack.c.h.b16 %v1309
      %v1359 = vunpack.c.l.b16 %v1310
      %v1360 = vunpack.c.h.b16 %v1310
      %v1361 = vunpack.c.l.b16 %v1311
      %v1362 = vunpack.c.h.b16 %v1311
      %v1363 = vunpack.c.l.b16 %v1312
      %v1364 = vunpack.c.h.b16 %v1312
      %v1365 = vunpack.c.l.b16 %v1313
      %v1366 = vunpack.c.h.b16 %v1313
      %v1367 = vunpack.c.l.b16 %v1314
      %v1368 = vunpack.c.h.b16 %v1314
      %v1369 = vunpack.c.l.b16 %v1315
      %v1370 = vunpack.c.h.b16 %v1315
      %v1371 = vunpack.c.l.b16 %v1316
      %v1372 = vunpack.c.h.b16 %v1316
      %v1373 = vunpack.c.l.b16 %v1317
      %v1374 = vunpack.c.h.b16 %v1317
      %v1375 = vunpack.c.l.b16 %v1318
      %v1376 = vunpack.c.h.b16 %v1318
      %v1377 = vunpack.c.l.b16 %v1319
      %v1378 = vunpack.c.h.b16 %v1319
      %v1379 = vunpack.c.l.b16 %v1320
      %v1380 = vunpack.c.h.b16 %v1320
      %v1381 = vpack.c.b16 %v1351, %v1349
      %v1382 = vpack.c.b16 %v1352, %v1350
      %v1383 = vpack.c.b16 %v1355, %v1353
      %v1384 = vpack.c.b16 %v1356, %v1354
      %v1385 = vpack.c.b16 %v1359, %v1357
      %v1386 = vpack.c.b16 %v1360, %v1358
      %v1387 = vpack.c.b16 %v1363, %v1361
      %v1388 = vpack.c.b16 %v1364, %v1362
      %v1389 = vpack.c.b16 %v1367, %v1365
      %v1390 = vpack.c.b16 %v1368, %v1366
      %v1391 = vpack.c.b16 %v1371, %v1369
      %v1392 = vpack.c.b16 %v1372, %v1370
      %v1393 = vpack.c.b16 %v1375, %v1373
      %v1394 = vpack.c.b16 %v1376, %v1374
      %v1395 = vpack.c.b16 %v1379, %v1377
      %v1396 = vpack.c.b16 %v1380, %v1378
      %1413 = vmatprep.subr.bf16.mxu0 %v1396
      %1414 = vmatpush1.bf16.msra.mxu0 %v1395
      %1415 = vmatprep.subr.bf16.mxu0 %v1394
      %1416 = vmatpush1.bf16.msra.mxu0 %v1393
      %1417 = vmatprep.subr.bf16.mxu0 %v1392
      %1418 = vmatpush1.bf16.msra.mxu0 %v1391
      %1419 = vmatprep.subr.bf16.mxu0 %v1390
      %1420 = vmatpush1.bf16.msra.mxu0 %v1389
      %1421 = vmatprep.subr.bf16.mxu0 %v1388
      %1422 = vmatpush1.bf16.msra.mxu0 %v1387
      %1423 = vmatprep.subr.bf16.mxu0 %v1386
      %1424 = vmatpush1.bf16.msra.mxu0 %v1385
      %1425 = vmatprep.subr.bf16.mxu0 %v1384
      %1426 = vmatpush1.bf16.msra.mxu0 %v1383
      %1427 = vmatprep.subr.bf16.mxu0 %v1382
      %1428 = vmatpush1.bf16.msra.mxu0 %v1381
      %1429 = vmatprep.subr.bf16.mxu0 0
      %1430 = vmatpush2.bf16.msra.mxu0 0
      %1431 = vmatprep.subr.bf16.mxu0 0
      %1432 = vmatpush2.bf16.msra.mxu0 0
      %1433 = vmatprep.subr.bf16.mxu0 0
      %1434 = vmatpush2.bf16.msra.mxu0 0
      %1435 = vmatprep.subr.bf16.mxu0 0
      %1436 = vmatpush2.bf16.msra.mxu0 0
      %1437 = vmatprep.subr.bf16.mxu0 0
      %1438 = vmatpush2.bf16.msra.mxu0 0
      %1439 = vmatprep.subr.bf16.mxu0 0
      %1440 = vmatpush2.bf16.msra.mxu0 0
      %1441 = vmatprep.subr.bf16.mxu0 0
      %1442 = vmatpush2.bf16.msra.mxu0 0
      %1443 = vmatprep.subr.bf16.mxu0 0
      %1444 = vmatpush2.bf16.msra.mxu0 0
      %1445 = vmatprep.mubr.bf16.mxu0 0
      %1446 = vmatmul.mubr.bf16.gmra.mxu0 %v1304
      %v1447 = vpop.f32.mrf.mxu0
      %v1448 = vadd.f32 %v1326, %v1447
      %v1449 = vpop.f32.mrf.mxu0
      %v1450 = vadd.f32 %v1330, %v1449
      %v1451 = vpop.f32.mrf.mxu0
      %v1452 = vpop.f32.mrf.mxu0
      %1453 = vdwg.mxu0
      %v1454 = vmax.f32 %v1448, 0.0
      %v1455 = vmax.f32 %v1450, 0.0
      %v1456 = vpack.c.bf16 %v1454, %v1454
      %v1457 = vpack.c.bf16 %v1455, %v1455
      %v1460 = vunpack.c.l.b16 %v1456
      %v1461 = vunpack.c.l.b16 %v1457
      %v1462 = vpack.c.b16 %v1461, %v1460
      %1464 = vst [vmem:[#allocation2] sm:$0xff] %v1462
      %1465 = vst.msk [vmem:[#allocation3] sm:$0xff] %vm1297, 0.0
    $region53: #{_vae_forward_jit.1} parent=1 // pred_fallthru
      _
    %v1466 = vld [vmem:[#allocation2] sm:$0xff]
    %v1467 = vld [vmem:[#allocation8] sm:$0xff]
    %v1468 = vld [vmem:[#allocation8 + $0x8] sm:$0xff]
    %v1469 = vld [vmem:[#allocation8 + $0x10] sm:$0xff]
    %v1470 = vld [vmem:[#allocation8 + $0x18] sm:$0xff]
    %v1471 = vld [vmem:[#allocation8 + $0x20] sm:$0xff]
    %v1472 = vld [vmem:[#allocation8 + $0x28] sm:$0xff]
    %v1473 = vld [vmem:[#allocation8 + $0x30] sm:$0xff]
    %v1474 = vld [vmem:[#allocation8 + $0x38] sm:$0xff]
    %v1475 = vld [vmem:[#allocation8 + $0x40] sm:$0xff]
    %v1476 = vld [vmem:[#allocation8 + $0x48] sm:$0xff]
    %v1477 = vld [vmem:[#allocation8 + $0x50] sm:$0xff]
    %v1478 = vld [vmem:[#allocation8 + $0x58] sm:$0xff]
    %v1479 = vld [vmem:[#allocation8 + $0x60] sm:$0xff]
    %v1480 = vld [vmem:[#allocation8 + $0x68] sm:$0xff]
    %v1481 = vld [vmem:[#allocation8 + $0x70] sm:$0xff]
    %v1482 = vld [vmem:[#allocation8 + $0x78] sm:$0xff]
    %v1483 = vld [vmem:[#allocation8 + $0x80] sm:$0xff]
    %v1484 = vld [vmem:[#allocation8 + $0x88] sm:$0xff]
    %v1485 = vld [vmem:[#allocation8 + $0x90] sm:$0xff]
    %v1486 = vld [vmem:[#allocation8 + $0x98] sm:$0xff]
    %v1487 = vld [vmem:[#allocation8 + $0xa0] sm:$0xff]
    %v1488 = vld [vmem:[#allocation8 + $0xa8] sm:$0xff]
    %v1489 = vld [vmem:[#allocation8 + $0xb0] sm:$0xff]
    %v1490 = vld [vmem:[#allocation8 + $0xb8] sm:$0xff]
    %v1491 = vld [vmem:[#allocation8 + $0xc0] sm:$0xff]
    %v1492 = vld [vmem:[#allocation8 + $0xc8] sm:$0xff]
    %v1493 = vld [vmem:[#allocation8 + $0xd0] sm:$0xff]
    %v1494 = vld [vmem:[#allocation8 + $0xd8] sm:$0xff]
    %v1495 = vld [vmem:[#allocation8 + $0xe0] sm:$0xff]
    %v1496 = vld [vmem:[#allocation8 + $0xe8] sm:$0xff]
    %v1497 = vld [vmem:[#allocation8 + $0xf0] sm:$0xff]
    %v1498 = vld [vmem:[#allocation8 + $0xf8] sm:$0xff]
    %v1499 = vld [vmem:[#allocation8 + $0x100] sm:$0xff]
    %v1500 = vld [vmem:[#allocation8 + $0x108] sm:$0xff]
    %v1501 = vld [vmem:[#allocation8 + $0x110] sm:$0xff]
    %v1502 = vld [vmem:[#allocation8 + $0x118] sm:$0xff]
    %v1503 = vld [vmem:[#allocation8 + $0x120] sm:$0xff]
    %v1504 = vld [vmem:[#allocation8 + $0x128] sm:$0xff]
    %v1505 = vld [vmem:[#allocation8 + $0x130] sm:$0xff]
    %v1506 = vld [vmem:[#allocation8 + $0x138] sm:$0xff]
    %v1507 = vld [vmem:[#allocation8 + $0x140] sm:$0xff]
    %v1508 = vld [vmem:[#allocation8 + $0x148] sm:$0xff]
    %v1509 = vld [vmem:[#allocation8 + $0x150] sm:$0xff]
    %v1510 = vld [vmem:[#allocation8 + $0x158] sm:$0xff]
    %v1511 = vld [vmem:[#allocation8 + $0x160] sm:$0xff]
    %v1512 = vld [vmem:[#allocation8 + $0x168] sm:$0xff]
    %v1513 = vld [vmem:[#allocation8 + $0x170] sm:$0xff]
    %v1514 = vld [vmem:[#allocation8 + $0x178] sm:$0xff]
    %v1515 = vld [vmem:[#allocation8 + $0x180] sm:$0xff]
    %v1516 = vld [vmem:[#allocation8 + $0x188] sm:$0xff]
    %v1517 = vld [vmem:[#allocation8 + $0x190] sm:$0xff]
    %v1518 = vld [vmem:[#allocation8 + $0x198] sm:$0xff]
    %v1519 = vld [vmem:[#allocation8 + $0x1a0] sm:$0xff]
    %v1520 = vld [vmem:[#allocation8 + $0x1a8] sm:$0xff]
    %v1521 = vld [vmem:[#allocation8 + $0x1b0] sm:$0xff]
    %v1522 = vld [vmem:[#allocation8 + $0x1b8] sm:$0xff]
    %v1523 = vld [vmem:[#allocation8 + $0x1c0] sm:$0xff]
    %v1524 = vld [vmem:[#allocation8 + $0x1c8] sm:$0xff]
    %v1525 = vld [vmem:[#allocation8 + $0x1d0] sm:$0xff]
    %v1526 = vld [vmem:[#allocation8 + $0x1d8] sm:$0xff]
    %v1527 = vld [vmem:[#allocation8 + $0x1e0] sm:$0xff]
    %v1528 = vld [vmem:[#allocation8 + $0x1e8] sm:$0xff]
    %v1529 = vld [vmem:[#allocation8 + $0x1f0] sm:$0xff]
    %v1530 = vld [vmem:[#allocation8 + $0x1f8] sm:$0xff]
    %v1531 = vld [vmem:[#allocation8 + $0x200] sm:$0xff]
    %v1532 = vld [vmem:[#allocation8 + $0x208] sm:$0xff]
    %v1533 = vld [vmem:[#allocation8 + $0x210] sm:$0xff]
    %v1534 = vld [vmem:[#allocation8 + $0x218] sm:$0xff]
    %v1535 = vld [vmem:[#allocation8 + $0x220] sm:$0xff]
    %v1536 = vld [vmem:[#allocation8 + $0x228] sm:$0xff]
    %v1537 = vld [vmem:[#allocation8 + $0x230] sm:$0xff]
    %v1538 = vld [vmem:[#allocation8 + $0x238] sm:$0xff]
    %v1539 = vld [vmem:[#allocation8 + $0x240] sm:$0xff]
    %v1540 = vld [vmem:[#allocation8 + $0x248] sm:$0xff]
    %v1541 = vld [vmem:[#allocation8 + $0x250] sm:$0xff]
    %v1542 = vld [vmem:[#allocation8 + $0x258] sm:$0xff]
    %v1543 = vld [vmem:[#allocation8 + $0x260] sm:$0xff]
    %v1544 = vld [vmem:[#allocation8 + $0x268] sm:$0xff]
    %v1545 = vld [vmem:[#allocation8 + $0x270] sm:$0xff]
    %v1546 = vld [vmem:[#allocation8 + $0x278] sm:$0xff]
    %v1547 = vld [vmem:[#allocation8 + $0x280] sm:$0xff]
    %v1548 = vld [vmem:[#allocation8 + $0x288] sm:$0xff]
    %v1549 = vld [vmem:[#allocation8 + $0x290] sm:$0xff]
    %v1550 = vld [vmem:[#allocation8 + $0x298] sm:$0xff]
    %v1551 = vld [vmem:[#allocation8 + $0x2a0] sm:$0xff]
    %v1552 = vld [vmem:[#allocation8 + $0x2a8] sm:$0xff]
    %v1553 = vld [vmem:[#allocation8 + $0x2b0] sm:$0xff]
    %v1554 = vld [vmem:[#allocation8 + $0x2b8] sm:$0xff]
    %v1555 = vld [vmem:[#allocation8 + $0x2c0] sm:$0xff]
    %v1556 = vld [vmem:[#allocation8 + $0x2c8] sm:$0xff]
    %v1557 = vld [vmem:[#allocation8 + $0x2d0] sm:$0xff]
    %v1558 = vld [vmem:[#allocation8 + $0x2d8] sm:$0xff]
    %v1559 = vld [vmem:[#allocation8 + $0x2e0] sm:$0xff]
    %v1560 = vld [vmem:[#allocation8 + $0x2e8] sm:$0xff]
    %v1561 = vld [vmem:[#allocation8 + $0x2f0] sm:$0xff]
    %v1562 = vld [vmem:[#allocation8 + $0x2f8] sm:$0xff]
    %v1563 = vld [vmem:[#allocation8 + $0x300] sm:$0xff]
    %v1564 = vld [vmem:[#allocation8 + $0x308] sm:$0xff]
    %v1565 = vld [vmem:[#allocation8 + $0x310] sm:$0xff]
    %v1566 = vld [vmem:[#allocation8 + $0x318] sm:$0xff]
    %v1567 = vld [vmem:[#allocation8 + $0x320] sm:$0xff]
    %v1568 = vld [vmem:[#allocation8 + $0x328] sm:$0xff]
    %v1569 = vld [vmem:[#allocation8 + $0x330] sm:$0xff]
    %v1570 = vld [vmem:[#allocation8 + $0x338] sm:$0xff]
    %v1571 = vld [vmem:[#allocation8 + $0x340] sm:$0xff]
    %v1572 = vld [vmem:[#allocation8 + $0x348] sm:$0xff]
    %v1573 = vld [vmem:[#allocation8 + $0x350] sm:$0xff]
    %v1574 = vld [vmem:[#allocation8 + $0x358] sm:$0xff]
    %v1575 = vld [vmem:[#allocation8 + $0x360] sm:$0xff]
    %v1576 = vld [vmem:[#allocation8 + $0x368] sm:$0xff]
    %v1577 = vld [vmem:[#allocation8 + $0x370] sm:$0xff]
    %v1578 = vld [vmem:[#allocation8 + $0x378] sm:$0xff]
    %v1579 = vld [vmem:[#allocation8 + $0x380] sm:$0xff]
    %v1580 = vld [vmem:[#allocation8 + $0x388] sm:$0xff]
    %v1581 = vld [vmem:[#allocation8 + $0x390] sm:$0xff]
    %v1582 = vld [vmem:[#allocation8 + $0x398] sm:$0xff]
    %v1583 = vld [vmem:[#allocation8 + $0x3a0] sm:$0xff]
    %v1584 = vld [vmem:[#allocation8 + $0x3a8] sm:$0xff]
    %v1585 = vld [vmem:[#allocation8 + $0x3b0] sm:$0xff]
    %v1586 = vld [vmem:[#allocation8 + $0x3b8] sm:$0xff]
    %v1587 = vld [vmem:[#allocation8 + $0x3c0] sm:$0xff]
    %v1588 = vld [vmem:[#allocation8 + $0x3c8] sm:$0xff]
    %v1589 = vld [vmem:[#allocation8 + $0x3d0] sm:$0xff]
    %v1590 = vld [vmem:[#allocation8 + $0x3d8] sm:$0xff]
    %v1591 = vld [vmem:[#allocation8 + $0x3e0] sm:$0xff]
    %v1592 = vld [vmem:[#allocation8 + $0x3e8] sm:$0xff]
    %v1593 = vld [vmem:[#allocation8 + $0x3f0] sm:$0xff]
    %v1594 = vld [vmem:[#allocation8 + $0x3f8] sm:$0xff]
    %v1595 = vld [vmem:[%s9] sm:$0xff]
    %v1597 = vlaneseq
    %v1598 = vshrl.u32 %v1597, 7
    %v1599 = vsub.s32 0, %v1598
    %v1600 = vrot.slane %v1595, %v1599
    %v1601 = vlaneseq
    %v1602 = vshrl.u32 %v1601, 7
    %v1603 = vsub.s32 1, %v1602
    %v1604 = vrot.slane %v1595, %v1603
    %v1605 = vlaneseq
    %v1606 = vshrl.u32 %v1605, 7
    %v1607 = vsub.s32 2, %v1606
    %v1608 = vrot.slane %v1595, %v1607
    %v1609 = vlaneseq
    %v1610 = vshrl.u32 %v1609, 7
    %v1611 = vsub.s32 3, %v1610
    %v1612 = vrot.slane %v1595, %v1611
    %v1613 = vlaneseq
    %v1614 = vshrl.u32 %v1613, 7
    %v1615 = vsub.s32 4, %v1614
    %v1616 = vrot.slane %v1595, %v1615
    %v1617 = vlaneseq
    %v1618 = vshrl.u32 %v1617, 7
    %v1619 = vsub.s32 5, %v1618
    %v1620 = vrot.slane %v1595, %v1619
    %v1621 = vlaneseq
    %v1622 = vshrl.u32 %v1621, 7
    %v1623 = vsub.s32 6, %v1622
    %v1624 = vrot.slane %v1595, %v1623
    %v1625 = vlaneseq
    %v1626 = vshrl.u32 %v1625, 7
    %v1627 = vsub.s32 7, %v1626
    %v1628 = vrot.slane %v1595, %v1627
    %v1638 = vunpack.c.l.b16 %v1466
    %v1639 = vunpack.c.h.b16 %v1466
    %v1640 = vpack.c.b16 %v1638, %v1638
    %v1641 = vpack.c.b16 %v1639, %v1639
    %v1772 = vunpack.c.l.b16 %v1467
    %v1773 = vunpack.c.h.b16 %v1467
    %v1774 = vunpack.c.l.b16 %v1468
    %v1775 = vunpack.c.h.b16 %v1468
    %v1776 = vunpack.c.l.b16 %v1469
    %v1777 = vunpack.c.h.b16 %v1469
    %v1778 = vunpack.c.l.b16 %v1470
    %v1779 = vunpack.c.h.b16 %v1470
    %v1780 = vunpack.c.l.b16 %v1471
    %v1781 = vunpack.c.h.b16 %v1471
    %v1782 = vunpack.c.l.b16 %v1472
    %v1783 = vunpack.c.h.b16 %v1472
    %v1784 = vunpack.c.l.b16 %v1473
    %v1785 = vunpack.c.h.b16 %v1473
    %v1786 = vunpack.c.l.b16 %v1474
    %v1787 = vunpack.c.h.b16 %v1474
    %v1788 = vunpack.c.l.b16 %v1475
    %v1789 = vunpack.c.h.b16 %v1475
    %v1790 = vunpack.c.l.b16 %v1476
    %v1791 = vunpack.c.h.b16 %v1476
    %v1792 = vunpack.c.l.b16 %v1477
    %v1793 = vunpack.c.h.b16 %v1477
    %v1794 = vunpack.c.l.b16 %v1478
    %v1795 = vunpack.c.h.b16 %v1478
    %v1796 = vunpack.c.l.b16 %v1479
    %v1797 = vunpack.c.h.b16 %v1479
    %v1798 = vunpack.c.l.b16 %v1480
    %v1799 = vunpack.c.h.b16 %v1480
    %v1800 = vunpack.c.l.b16 %v1481
    %v1801 = vunpack.c.h.b16 %v1481
    %v1802 = vunpack.c.l.b16 %v1482
    %v1803 = vunpack.c.h.b16 %v1482
    %v1804 = vunpack.c.l.b16 %v1483
    %v1805 = vunpack.c.h.b16 %v1483
    %v1806 = vunpack.c.l.b16 %v1484
    %v1807 = vunpack.c.h.b16 %v1484
    %v1808 = vunpack.c.l.b16 %v1485
    %v1809 = vunpack.c.h.b16 %v1485
    %v1810 = vunpack.c.l.b16 %v1486
    %v1811 = vunpack.c.h.b16 %v1486
    %v1812 = vunpack.c.l.b16 %v1487
    %v1813 = vunpack.c.h.b16 %v1487
    %v1814 = vunpack.c.l.b16 %v1488
    %v1815 = vunpack.c.h.b16 %v1488
    %v1816 = vunpack.c.l.b16 %v1489
    %v1817 = vunpack.c.h.b16 %v1489
    %v1818 = vunpack.c.l.b16 %v1490
    %v1819 = vunpack.c.h.b16 %v1490
    %v1820 = vunpack.c.l.b16 %v1491
    %v1821 = vunpack.c.h.b16 %v1491
    %v1822 = vunpack.c.l.b16 %v1492
    %v1823 = vunpack.c.h.b16 %v1492
    %v1824 = vunpack.c.l.b16 %v1493
    %v1825 = vunpack.c.h.b16 %v1493
    %v1826 = vunpack.c.l.b16 %v1494
    %v1827 = vunpack.c.h.b16 %v1494
    %v1828 = vunpack.c.l.b16 %v1495
    %v1829 = vunpack.c.h.b16 %v1495
    %v1830 = vunpack.c.l.b16 %v1496
    %v1831 = vunpack.c.h.b16 %v1496
    %v1832 = vunpack.c.l.b16 %v1497
    %v1833 = vunpack.c.h.b16 %v1497
    %v1834 = vunpack.c.l.b16 %v1498
    %v1835 = vunpack.c.h.b16 %v1498
    %v1836 = vunpack.c.l.b16 %v1499
    %v1837 = vunpack.c.h.b16 %v1499
    %v1838 = vunpack.c.l.b16 %v1500
    %v1839 = vunpack.c.h.b16 %v1500
    %v1840 = vunpack.c.l.b16 %v1501
    %v1841 = vunpack.c.h.b16 %v1501
    %v1842 = vunpack.c.l.b16 %v1502
    %v1843 = vunpack.c.h.b16 %v1502
    %v1844 = vunpack.c.l.b16 %v1503
    %v1845 = vunpack.c.h.b16 %v1503
    %v1846 = vunpack.c.l.b16 %v1504
    %v1847 = vunpack.c.h.b16 %v1504
    %v1848 = vunpack.c.l.b16 %v1505
    %v1849 = vunpack.c.h.b16 %v1505
    %v1850 = vunpack.c.l.b16 %v1506
    %v1851 = vunpack.c.h.b16 %v1506
    %v1852 = vunpack.c.l.b16 %v1507
    %v1853 = vunpack.c.h.b16 %v1507
    %v1854 = vunpack.c.l.b16 %v1508
    %v1855 = vunpack.c.h.b16 %v1508
    %v1856 = vunpack.c.l.b16 %v1509
    %v1857 = vunpack.c.h.b16 %v1509
    %v1858 = vunpack.c.l.b16 %v1510
    %v1859 = vunpack.c.h.b16 %v1510
    %v1860 = vunpack.c.l.b16 %v1511
    %v1861 = vunpack.c.h.b16 %v1511
    %v1862 = vunpack.c.l.b16 %v1512
    %v1863 = vunpack.c.h.b16 %v1512
    %v1864 = vunpack.c.l.b16 %v1513
    %v1865 = vunpack.c.h.b16 %v1513
    %v1866 = vunpack.c.l.b16 %v1514
    %v1867 = vunpack.c.h.b16 %v1514
    %v1868 = vunpack.c.l.b16 %v1515
    %v1869 = vunpack.c.h.b16 %v1515
    %v1870 = vunpack.c.l.b16 %v1516
    %v1871 = vunpack.c.h.b16 %v1516
    %v1872 = vunpack.c.l.b16 %v1517
    %v1873 = vunpack.c.h.b16 %v1517
    %v1874 = vunpack.c.l.b16 %v1518
    %v1875 = vunpack.c.h.b16 %v1518
    %v1876 = vunpack.c.l.b16 %v1519
    %v1877 = vunpack.c.h.b16 %v1519
    %v1878 = vunpack.c.l.b16 %v1520
    %v1879 = vunpack.c.h.b16 %v1520
    %v1880 = vunpack.c.l.b16 %v1521
    %v1881 = vunpack.c.h.b16 %v1521
    %v1882 = vunpack.c.l.b16 %v1522
    %v1883 = vunpack.c.h.b16 %v1522
    %v1884 = vunpack.c.l.b16 %v1523
    %v1885 = vunpack.c.h.b16 %v1523
    %v1886 = vunpack.c.l.b16 %v1524
    %v1887 = vunpack.c.h.b16 %v1524
    %v1888 = vunpack.c.l.b16 %v1525
    %v1889 = vunpack.c.h.b16 %v1525
    %v1890 = vunpack.c.l.b16 %v1526
    %v1891 = vunpack.c.h.b16 %v1526
    %v1892 = vunpack.c.l.b16 %v1527
    %v1893 = vunpack.c.h.b16 %v1527
    %v1894 = vunpack.c.l.b16 %v1528
    %v1895 = vunpack.c.h.b16 %v1528
    %v1896 = vunpack.c.l.b16 %v1529
    %v1897 = vunpack.c.h.b16 %v1529
    %v1898 = vunpack.c.l.b16 %v1530
    %v1899 = vunpack.c.h.b16 %v1530
    %v1900 = vunpack.c.l.b16 %v1531
    %v1901 = vunpack.c.h.b16 %v1531
    %v1902 = vunpack.c.l.b16 %v1532
    %v1903 = vunpack.c.h.b16 %v1532
    %v1904 = vunpack.c.l.b16 %v1533
    %v1905 = vunpack.c.h.b16 %v1533
    %v1906 = vunpack.c.l.b16 %v1534
    %v1907 = vunpack.c.h.b16 %v1534
    %v1908 = vunpack.c.l.b16 %v1535
    %v1909 = vunpack.c.h.b16 %v1535
    %v1910 = vunpack.c.l.b16 %v1536
    %v1911 = vunpack.c.h.b16 %v1536
    %v1912 = vunpack.c.l.b16 %v1537
    %v1913 = vunpack.c.h.b16 %v1537
    %v1914 = vunpack.c.l.b16 %v1538
    %v1915 = vunpack.c.h.b16 %v1538
    %v1916 = vunpack.c.l.b16 %v1539
    %v1917 = vunpack.c.h.b16 %v1539
    %v1918 = vunpack.c.l.b16 %v1540
    %v1919 = vunpack.c.h.b16 %v1540
    %v1920 = vunpack.c.l.b16 %v1541
    %v1921 = vunpack.c.h.b16 %v1541
    %v1922 = vunpack.c.l.b16 %v1542
    %v1923 = vunpack.c.h.b16 %v1542
    %v1924 = vunpack.c.l.b16 %v1543
    %v1925 = vunpack.c.h.b16 %v1543
    %v1926 = vunpack.c.l.b16 %v1544
    %v1927 = vunpack.c.h.b16 %v1544
    %v1928 = vunpack.c.l.b16 %v1545
    %v1929 = vunpack.c.h.b16 %v1545
    %v1930 = vunpack.c.l.b16 %v1546
    %v1931 = vunpack.c.h.b16 %v1546
    %v1932 = vunpack.c.l.b16 %v1547
    %v1933 = vunpack.c.h.b16 %v1547
    %v1934 = vunpack.c.l.b16 %v1548
    %v1935 = vunpack.c.h.b16 %v1548
    %v1936 = vunpack.c.l.b16 %v1549
    %v1937 = vunpack.c.h.b16 %v1549
    %v1938 = vunpack.c.l.b16 %v1550
    %v1939 = vunpack.c.h.b16 %v1550
    %v1940 = vunpack.c.l.b16 %v1551
    %v1941 = vunpack.c.h.b16 %v1551
    %v1942 = vunpack.c.l.b16 %v1552
    %v1943 = vunpack.c.h.b16 %v1552
    %v1944 = vunpack.c.l.b16 %v1553
    %v1945 = vunpack.c.h.b16 %v1553
    %v1946 = vunpack.c.l.b16 %v1554
    %v1947 = vunpack.c.h.b16 %v1554
    %v1948 = vunpack.c.l.b16 %v1555
    %v1949 = vunpack.c.h.b16 %v1555
    %v1950 = vunpack.c.l.b16 %v1556
    %v1951 = vunpack.c.h.b16 %v1556
    %v1952 = vunpack.c.l.b16 %v1557
    %v1953 = vunpack.c.h.b16 %v1557
    %v1954 = vunpack.c.l.b16 %v1558
    %v1955 = vunpack.c.h.b16 %v1558
    %v1956 = vunpack.c.l.b16 %v1559
    %v1957 = vunpack.c.h.b16 %v1559
    %v1958 = vunpack.c.l.b16 %v1560
    %v1959 = vunpack.c.h.b16 %v1560
    %v1960 = vunpack.c.l.b16 %v1561
    %v1961 = vunpack.c.h.b16 %v1561
    %v1962 = vunpack.c.l.b16 %v1562
    %v1963 = vunpack.c.h.b16 %v1562
    %v1964 = vunpack.c.l.b16 %v1563
    %v1965 = vunpack.c.h.b16 %v1563
    %v1966 = vunpack.c.l.b16 %v1564
    %v1967 = vunpack.c.h.b16 %v1564
    %v1968 = vunpack.c.l.b16 %v1565
    %v1969 = vunpack.c.h.b16 %v1565
    %v1970 = vunpack.c.l.b16 %v1566
    %v1971 = vunpack.c.h.b16 %v1566
    %v1972 = vunpack.c.l.b16 %v1567
    %v1973 = vunpack.c.h.b16 %v1567
    %v1974 = vunpack.c.l.b16 %v1568
    %v1975 = vunpack.c.h.b16 %v1568
    %v1976 = vunpack.c.l.b16 %v1569
    %v1977 = vunpack.c.h.b16 %v1569
    %v1978 = vunpack.c.l.b16 %v1570
    %v1979 = vunpack.c.h.b16 %v1570
    %v1980 = vunpack.c.l.b16 %v1571
    %v1981 = vunpack.c.h.b16 %v1571
    %v1982 = vunpack.c.l.b16 %v1572
    %v1983 = vunpack.c.h.b16 %v1572
    %v1984 = vunpack.c.l.b16 %v1573
    %v1985 = vunpack.c.h.b16 %v1573
    %v1986 = vunpack.c.l.b16 %v1574
    %v1987 = vunpack.c.h.b16 %v1574
    %v1988 = vunpack.c.l.b16 %v1575
    %v1989 = vunpack.c.h.b16 %v1575
    %v1990 = vunpack.c.l.b16 %v1576
    %v1991 = vunpack.c.h.b16 %v1576
    %v1992 = vunpack.c.l.b16 %v1577
    %v1993 = vunpack.c.h.b16 %v1577
    %v1994 = vunpack.c.l.b16 %v1578
    %v1995 = vunpack.c.h.b16 %v1578
    %v1996 = vunpack.c.l.b16 %v1579
    %v1997 = vunpack.c.h.b16 %v1579
    %v1998 = vunpack.c.l.b16 %v1580
    %v1999 = vunpack.c.h.b16 %v1580
    %v2000 = vunpack.c.l.b16 %v1581
    %v2001 = vunpack.c.h.b16 %v1581
    %v2002 = vunpack.c.l.b16 %v1582
    %v2003 = vunpack.c.h.b16 %v1582
    %v2004 = vunpack.c.l.b16 %v1583
    %v2005 = vunpack.c.h.b16 %v1583
    %v2006 = vunpack.c.l.b16 %v1584
    %v2007 = vunpack.c.h.b16 %v1584
    %v2008 = vunpack.c.l.b16 %v1585
    %v2009 = vunpack.c.h.b16 %v1585
    %v2010 = vunpack.c.l.b16 %v1586
    %v2011 = vunpack.c.h.b16 %v1586
    %v2012 = vunpack.c.l.b16 %v1587
    %v2013 = vunpack.c.h.b16 %v1587
    %v2014 = vunpack.c.l.b16 %v1588
    %v2015 = vunpack.c.h.b16 %v1588
    %v2016 = vunpack.c.l.b16 %v1589
    %v2017 = vunpack.c.h.b16 %v1589
    %v2018 = vunpack.c.l.b16 %v1590
    %v2019 = vunpack.c.h.b16 %v1590
    %v2020 = vunpack.c.l.b16 %v1591
    %v2021 = vunpack.c.h.b16 %v1591
    %v2022 = vunpack.c.l.b16 %v1592
    %v2023 = vunpack.c.h.b16 %v1592
    %v2024 = vunpack.c.l.b16 %v1593
    %v2025 = vunpack.c.h.b16 %v1593
    %v2026 = vunpack.c.l.b16 %v1594
    %v2027 = vunpack.c.h.b16 %v1594
    %v2028 = vpack.c.b16 %v1780, %v1772
    %v2029 = vpack.c.b16 %v1781, %v1773
    %v2030 = vpack.c.b16 %v1782, %v1774
    %v2031 = vpack.c.b16 %v1783, %v1775
    %v2032 = vpack.c.b16 %v1784, %v1776
    %v2033 = vpack.c.b16 %v1785, %v1777
    %v2034 = vpack.c.b16 %v1786, %v1778
    %v2035 = vpack.c.b16 %v1787, %v1779
    %v2036 = vpack.c.b16 %v1796, %v1788
    %v2037 = vpack.c.b16 %v1797, %v1789
    %v2038 = vpack.c.b16 %v1798, %v1790
    %v2039 = vpack.c.b16 %v1799, %v1791
    %v2040 = vpack.c.b16 %v1800, %v1792
    %v2041 = vpack.c.b16 %v1801, %v1793
    %v2042 = vpack.c.b16 %v1802, %v1794
    %v2043 = vpack.c.b16 %v1803, %v1795
    %v2044 = vpack.c.b16 %v1812, %v1804
    %v2045 = vpack.c.b16 %v1813, %v1805
    %v2046 = vpack.c.b16 %v1814, %v1806
    %v2047 = vpack.c.b16 %v1815, %v1807
    %v2048 = vpack.c.b16 %v1816, %v1808
    %v2049 = vpack.c.b16 %v1817, %v1809
    %v2050 = vpack.c.b16 %v1818, %v1810
    %v2051 = vpack.c.b16 %v1819, %v1811
    %v2052 = vpack.c.b16 %v1828, %v1820
    %v2053 = vpack.c.b16 %v1829, %v1821
    %v2054 = vpack.c.b16 %v1830, %v1822
    %v2055 = vpack.c.b16 %v1831, %v1823
    %v2056 = vpack.c.b16 %v1832, %v1824
    %v2057 = vpack.c.b16 %v1833, %v1825
    %v2058 = vpack.c.b16 %v1834, %v1826
    %v2059 = vpack.c.b16 %v1835, %v1827
    %v2060 = vpack.c.b16 %v1844, %v1836
    %v2061 = vpack.c.b16 %v1845, %v1837
    %v2062 = vpack.c.b16 %v1846, %v1838
    %v2063 = vpack.c.b16 %v1847, %v1839
    %v2064 = vpack.c.b16 %v1848, %v1840
    %v2065 = vpack.c.b16 %v1849, %v1841
    %v2066 = vpack.c.b16 %v1850, %v1842
    %v2067 = vpack.c.b16 %v1851, %v1843
    %v2068 = vpack.c.b16 %v1860, %v1852
    %v2069 = vpack.c.b16 %v1861, %v1853
    %v2070 = vpack.c.b16 %v1862, %v1854
    %v2071 = vpack.c.b16 %v1863, %v1855
    %v2072 = vpack.c.b16 %v1864, %v1856
    %v2073 = vpack.c.b16 %v1865, %v1857
    %v2074 = vpack.c.b16 %v1866, %v1858
    %v2075 = vpack.c.b16 %v1867, %v1859
    %v2076 = vpack.c.b16 %v1876, %v1868
    %v2077 = vpack.c.b16 %v1877, %v1869
    %v2078 = vpack.c.b16 %v1878, %v1870
    %v2079 = vpack.c.b16 %v1879, %v1871
    %v2080 = vpack.c.b16 %v1880, %v1872
    %v2081 = vpack.c.b16 %v1881, %v1873
    %v2082 = vpack.c.b16 %v1882, %v1874
    %v2083 = vpack.c.b16 %v1883, %v1875
    %v2084 = vpack.c.b16 %v1892, %v1884
    %v2085 = vpack.c.b16 %v1893, %v1885
    %v2086 = vpack.c.b16 %v1894, %v1886
    %v2087 = vpack.c.b16 %v1895, %v1887
    %v2088 = vpack.c.b16 %v1896, %v1888
    %v2089 = vpack.c.b16 %v1897, %v1889
    %v2090 = vpack.c.b16 %v1898, %v1890
    %v2091 = vpack.c.b16 %v1899, %v1891
    %v2092 = vpack.c.b16 %v1908, %v1900
    %v2093 = vpack.c.b16 %v1909, %v1901
    %v2094 = vpack.c.b16 %v1910, %v1902
    %v2095 = vpack.c.b16 %v1911, %v1903
    %v2096 = vpack.c.b16 %v1912, %v1904
    %v2097 = vpack.c.b16 %v1913, %v1905
    %v2098 = vpack.c.b16 %v1914, %v1906
    %v2099 = vpack.c.b16 %v1915, %v1907
    %v2100 = vpack.c.b16 %v1924, %v1916
    %v2101 = vpack.c.b16 %v1925, %v1917
    %v2102 = vpack.c.b16 %v1926, %v1918
    %v2103 = vpack.c.b16 %v1927, %v1919
    %v2104 = vpack.c.b16 %v1928, %v1920
    %v2105 = vpack.c.b16 %v1929, %v1921
    %v2106 = vpack.c.b16 %v1930, %v1922
    %v2107 = vpack.c.b16 %v1931, %v1923
    %v2108 = vpack.c.b16 %v1940, %v1932
    %v2109 = vpack.c.b16 %v1941, %v1933
    %v2110 = vpack.c.b16 %v1942, %v1934
    %v2111 = vpack.c.b16 %v1943, %v1935
    %v2112 = vpack.c.b16 %v1944, %v1936
    %v2113 = vpack.c.b16 %v1945, %v1937
    %v2114 = vpack.c.b16 %v1946, %v1938
    %v2115 = vpack.c.b16 %v1947, %v1939
    %v2116 = vpack.c.b16 %v1956, %v1948
    %v2117 = vpack.c.b16 %v1957, %v1949
    %v2118 = vpack.c.b16 %v1958, %v1950
    %v2119 = vpack.c.b16 %v1959, %v1951
    %v2120 = vpack.c.b16 %v1960, %v1952
    %v2121 = vpack.c.b16 %v1961, %v1953
    %v2122 = vpack.c.b16 %v1962, %v1954
    %v2123 = vpack.c.b16 %v1963, %v1955
    %v2124 = vpack.c.b16 %v1972, %v1964
    %v2125 = vpack.c.b16 %v1973, %v1965
    %v2126 = vpack.c.b16 %v1974, %v1966
    %v2127 = vpack.c.b16 %v1975, %v1967
    %v2128 = vpack.c.b16 %v1976, %v1968
    %v2129 = vpack.c.b16 %v1977, %v1969
    %v2130 = vpack.c.b16 %v1978, %v1970
    %v2131 = vpack.c.b16 %v1979, %v1971
    %v2132 = vpack.c.b16 %v1988, %v1980
    %v2133 = vpack.c.b16 %v1989, %v1981
    %v2134 = vpack.c.b16 %v1990, %v1982
    %v2135 = vpack.c.b16 %v1991, %v1983
    %v2136 = vpack.c.b16 %v1992, %v1984
    %v2137 = vpack.c.b16 %v1993, %v1985
    %v2138 = vpack.c.b16 %v1994, %v1986
    %v2139 = vpack.c.b16 %v1995, %v1987
    %v2140 = vpack.c.b16 %v2004, %v1996
    %v2141 = vpack.c.b16 %v2005, %v1997
    %v2142 = vpack.c.b16 %v2006, %v1998
    %v2143 = vpack.c.b16 %v2007, %v1999
    %v2144 = vpack.c.b16 %v2008, %v2000
    %v2145 = vpack.c.b16 %v2009, %v2001
    %v2146 = vpack.c.b16 %v2010, %v2002
    %v2147 = vpack.c.b16 %v2011, %v2003
    %v2148 = vpack.c.b16 %v2020, %v2012
    %v2149 = vpack.c.b16 %v2021, %v2013
    %v2150 = vpack.c.b16 %v2022, %v2014
    %v2151 = vpack.c.b16 %v2023, %v2015
    %v2152 = vpack.c.b16 %v2024, %v2016
    %v2153 = vpack.c.b16 %v2025, %v2017
    %v2154 = vpack.c.b16 %v2026, %v2018
    %v2155 = vpack.c.b16 %v2027, %v2019
    %2284 = vmatprep.subr.bf16.mxu0 %v2085
    %2285 = vmatpush1.bf16.msra.mxu0 %v2084
    %2286 = vmatprep.subr.bf16.mxu0 %v2077
    %2287 = vmatpush1.bf16.msra.mxu0 %v2076
    %2288 = vmatprep.subr.bf16.mxu0 %v2069
    %2289 = vmatpush1.bf16.msra.mxu0 %v2068
    %2290 = vmatprep.subr.bf16.mxu0 %v2061
    %2291 = vmatpush1.bf16.msra.mxu0 %v2060
    %2292 = vmatprep.subr.bf16.mxu0 %v2053
    %2293 = vmatpush1.bf16.msra.mxu0 %v2052
    %2294 = vmatprep.subr.bf16.mxu0 %v2045
    %2295 = vmatpush1.bf16.msra.mxu0 %v2044
    %2296 = vmatprep.subr.bf16.mxu0 %v2037
    %2297 = vmatpush1.bf16.msra.mxu0 %v2036
    %2298 = vmatprep.subr.bf16.mxu0 %v2029
    %2299 = vmatpush1.bf16.msra.mxu0 %v2028
    %2300 = vmatprep.subr.bf16.mxu0 %v2149
    %2301 = vmatpush2.bf16.msra.mxu0 %v2148
    %2302 = vmatprep.subr.bf16.mxu0 %v2141
    %2303 = vmatpush2.bf16.msra.mxu0 %v2140
    %2304 = vmatprep.subr.bf16.mxu0 %v2133
    %2305 = vmatpush2.bf16.msra.mxu0 %v2132
    %2306 = vmatprep.subr.bf16.mxu0 %v2125
    %2307 = vmatpush2.bf16.msra.mxu0 %v2124
    %2308 = vmatprep.subr.bf16.mxu0 %v2117
    %2309 = vmatpush2.bf16.msra.mxu0 %v2116
    %2310 = vmatprep.subr.bf16.mxu0 %v2109
    %2311 = vmatpush2.bf16.msra.mxu0 %v2108
    %2312 = vmatprep.subr.bf16.mxu0 %v2101
    %2313 = vmatpush2.bf16.msra.mxu0 %v2100
    %2314 = vmatprep.subr.bf16.mxu0 %v2093
    %2315 = vmatpush2.bf16.msra.mxu0 %v2092
    %2316 = vmatprep.mubr.bf16.mxu0 %v1641
    %2317 = vmatmul.mubr.bf16.gmra.mxu0 %v1640
    %v2318 = vpop.f32.mrf.mxu0
    %v2319 = vadd.f32 %v1600, %v2318
    %v2320 = vpop.f32.mrf.mxu0
    %v2321 = vadd.f32 %v1604, %v2320
    %v2322 = vpop.f32.mrf.mxu0
    %v2323 = vpop.f32.mrf.mxu0
    %2324 = vdwg.mxu0
    %2325 = vmatprep.subr.bf16.mxu0 %v2087
    %2326 = vmatpush1.bf16.msra.mxu0 %v2086
    %2327 = vmatprep.subr.bf16.mxu0 %v2079
    %2328 = vmatpush1.bf16.msra.mxu0 %v2078
    %2329 = vmatprep.subr.bf16.mxu0 %v2071
    %2330 = vmatpush1.bf16.msra.mxu0 %v2070
    %2331 = vmatprep.subr.bf16.mxu0 %v2063
    %2332 = vmatpush1.bf16.msra.mxu0 %v2062
    %2333 = vmatprep.subr.bf16.mxu0 %v2055
    %2334 = vmatpush1.bf16.msra.mxu0 %v2054
    %2335 = vmatprep.subr.bf16.mxu0 %v2047
    %2336 = vmatpush1.bf16.msra.mxu0 %v2046
    %2337 = vmatprep.subr.bf16.mxu0 %v2039
    %2338 = vmatpush1.bf16.msra.mxu0 %v2038
    %2339 = vmatprep.subr.bf16.mxu0 %v2031
    %2340 = vmatpush1.bf16.msra.mxu0 %v2030
    %2341 = vmatprep.subr.bf16.mxu0 %v2151
    %2342 = vmatpush2.bf16.msra.mxu0 %v2150
    %2343 = vmatprep.subr.bf16.mxu0 %v2143
    %2344 = vmatpush2.bf16.msra.mxu0 %v2142
    %2345 = vmatprep.subr.bf16.mxu0 %v2135
    %2346 = vmatpush2.bf16.msra.mxu0 %v2134
    %2347 = vmatprep.subr.bf16.mxu0 %v2127
    %2348 = vmatpush2.bf16.msra.mxu0 %v2126
    %2349 = vmatprep.subr.bf16.mxu0 %v2119
    %2350 = vmatpush2.bf16.msra.mxu0 %v2118
    %2351 = vmatprep.subr.bf16.mxu0 %v2111
    %2352 = vmatpush2.bf16.msra.mxu0 %v2110
    %2353 = vmatprep.subr.bf16.mxu0 %v2103
    %2354 = vmatpush2.bf16.msra.mxu0 %v2102
    %2355 = vmatprep.subr.bf16.mxu0 %v2095
    %2356 = vmatpush2.bf16.msra.mxu0 %v2094
    %2357 = vmatprep.mubr.bf16.mxu0 %v1641
    %2358 = vmatmul.mubr.bf16.gmra.mxu0 %v1640
    %v2359 = vpop.f32.mrf.mxu0
    %v2360 = vadd.f32 %v1608, %v2359
    %v2361 = vpop.f32.mrf.mxu0
    %v2362 = vadd.f32 %v1612, %v2361
    %v2363 = vpop.f32.mrf.mxu0
    %v2364 = vpop.f32.mrf.mxu0
    %2365 = vdwg.mxu0
    %2366 = vmatprep.subr.bf16.mxu0 %v2089
    %2367 = vmatpush1.bf16.msra.mxu0 %v2088
    %2368 = vmatprep.subr.bf16.mxu0 %v2081
    %2369 = vmatpush1.bf16.msra.mxu0 %v2080
    %2370 = vmatprep.subr.bf16.mxu0 %v2073
    %2371 = vmatpush1.bf16.msra.mxu0 %v2072
    %2372 = vmatprep.subr.bf16.mxu0 %v2065
    %2373 = vmatpush1.bf16.msra.mxu0 %v2064
    %2374 = vmatprep.subr.bf16.mxu0 %v2057
    %2375 = vmatpush1.bf16.msra.mxu0 %v2056
    %2376 = vmatprep.subr.bf16.mxu0 %v2049
    %2377 = vmatpush1.bf16.msra.mxu0 %v2048
    %2378 = vmatprep.subr.bf16.mxu0 %v2041
    %2379 = vmatpush1.bf16.msra.mxu0 %v2040
    %2380 = vmatprep.subr.bf16.mxu0 %v2033
    %2381 = vmatpush1.bf16.msra.mxu0 %v2032
    %2382 = vmatprep.subr.bf16.mxu0 %v2153
    %2383 = vmatpush2.bf16.msra.mxu0 %v2152
    %2384 = vmatprep.subr.bf16.mxu0 %v2145
    %2385 = vmatpush2.bf16.msra.mxu0 %v2144
    %2386 = vmatprep.subr.bf16.mxu0 %v2137
    %2387 = vmatpush2.bf16.msra.mxu0 %v2136
    %2388 = vmatprep.subr.bf16.mxu0 %v2129
    %2389 = vmatpush2.bf16.msra.mxu0 %v2128
    %2390 = vmatprep.subr.bf16.mxu0 %v2121
    %2391 = vmatpush2.bf16.msra.mxu0 %v2120
    %2392 = vmatprep.subr.bf16.mxu0 %v2113
    %2393 = vmatpush2.bf16.msra.mxu0 %v2112
    %2394 = vmatprep.subr.bf16.mxu0 %v2105
    %2395 = vmatpush2.bf16.msra.mxu0 %v2104
    %2396 = vmatprep.subr.bf16.mxu0 %v2097
    %2397 = vmatpush2.bf16.msra.mxu0 %v2096
    %2398 = vmatprep.mubr.bf16.mxu0 %v1641
    %2399 = vmatmul.mubr.bf16.gmra.mxu0 %v1640
    %v2400 = vpop.f32.mrf.mxu0
    %v2401 = vadd.f32 %v1616, %v2400
    %v2402 = vpop.f32.mrf.mxu0
    %v2403 = vadd.f32 %v1620, %v2402
    %v2404 = vpop.f32.mrf.mxu0
    %v2405 = vpop.f32.mrf.mxu0
    %2406 = vdwg.mxu0
    %2407 = vmatprep.subr.bf16.mxu0 %v2091
    %2408 = vmatpush1.bf16.msra.mxu0 %v2090
    %2409 = vmatprep.subr.bf16.mxu0 %v2083
    %2410 = vmatpush1.bf16.msra.mxu0 %v2082
    %2411 = vmatprep.subr.bf16.mxu0 %v2075
    %2412 = vmatpush1.bf16.msra.mxu0 %v2074
    %2413 = vmatprep.subr.bf16.mxu0 %v2067
    %2414 = vmatpush1.bf16.msra.mxu0 %v2066
    %2415 = vmatprep.subr.bf16.mxu0 %v2059
    %2416 = vmatpush1.bf16.msra.mxu0 %v2058
    %2417 = vmatprep.subr.bf16.mxu0 %v2051
    %2418 = vmatpush1.bf16.msra.mxu0 %v2050
    %2419 = vmatprep.subr.bf16.mxu0 %v2043
    %2420 = vmatpush1.bf16.msra.mxu0 %v2042
    %2421 = vmatprep.subr.bf16.mxu0 %v2035
    %2422 = vmatpush1.bf16.msra.mxu0 %v2034
    %2423 = vmatprep.subr.bf16.mxu0 %v2155
    %2424 = vmatpush2.bf16.msra.mxu0 %v2154
    %2425 = vmatprep.subr.bf16.mxu0 %v2147
    %2426 = vmatpush2.bf16.msra.mxu0 %v2146
    %2427 = vmatprep.subr.bf16.mxu0 %v2139
    %2428 = vmatpush2.bf16.msra.mxu0 %v2138
    %2429 = vmatprep.subr.bf16.mxu0 %v2131
    %2430 = vmatpush2.bf16.msra.mxu0 %v2130
    %2431 = vmatprep.subr.bf16.mxu0 %v2123
    %2432 = vmatpush2.bf16.msra.mxu0 %v2122
    %2433 = vmatprep.subr.bf16.mxu0 %v2115
    %2434 = vmatpush2.bf16.msra.mxu0 %v2114
    %2435 = vmatprep.subr.bf16.mxu0 %v2107
    %2436 = vmatpush2.bf16.msra.mxu0 %v2106
    %2437 = vmatprep.subr.bf16.mxu0 %v2099
    %2438 = vmatpush2.bf16.msra.mxu0 %v2098
    %2439 = vmatprep.mubr.bf16.mxu0 %v1641
    %2440 = vmatmul.mubr.bf16.gmra.mxu0 %v1640
    %v2441 = vpop.f32.mrf.mxu0
    %v2442 = vadd.f32 %v1624, %v2441
    %v2443 = vpop.f32.mrf.mxu0
    %v2444 = vadd.f32 %v1628, %v2443
    %v2445 = vpop.f32.mrf.mxu0
    %v2446 = vpop.f32.mrf.mxu0
    %2447 = vdwg.mxu0
    %2448 = vst [vmem:[%s10] sm:$0xff] %v2319
    %2449 = vst [vmem:[%s10 + $0x8] sm:$0xff] %v2321
    %2450 = vst [vmem:[%s10 + $0x10] sm:$0xff] %v2360
    %2451 = vst [vmem:[%s10 + $0x18] sm:$0xff] %v2362
    %2452 = vst [vmem:[%s10 + $0x20] sm:$0xff] %v2401
    %2453 = vst [vmem:[%s10 + $0x28] sm:$0xff] %v2403
    %2454 = vst [vmem:[%s10 + $0x30] sm:$0xff] %v2442
    %2455 = vst [vmem:[%s10 + $0x38] sm:$0xff] %v2444
    %v2456 = vld [vmem:[%s0] sm:$0xff]
    %v2457 = vld [vmem:[%s0 + $0x8] sm:$0xff]
    %v2458 = vld [vmem:[%s0 + $0x10] sm:$0xff]
    %v2459 = vld [vmem:[%s0 + $0x18] sm:$0xff]
    %v2460 = vld [vmem:[%s0 + $0x20] sm:$0xff]
    %v2461 = vld [vmem:[%s0 + $0x28] sm:$0xff]
    %v2462 = vld [vmem:[%s0 + $0x30] sm:$0xff]
    %v2463 = vld [vmem:[%s0 + $0x38] sm:$0xff]
    %v2464 = vsub.f32 %v2456, %v2319
    %v2465 = vsub.f32 %v2457, %v2321
    %v2466 = vsub.f32 %v2458, %v2360
    %v2467 = vsub.f32 %v2459, %v2362
    %v2468 = vsub.f32 %v2460, %v2401
    %v2469 = vsub.f32 %v2461, %v2403
    %v2470 = vsub.f32 %v2462, %v2442
    %v2471 = vsub.f32 %v2463, %v2444
    %v2472 = vld [vmem:[#allocation3] sm:$0xff]
    %v2473 = vmul.f32 %v2464, %v2464
    %v2474 = vmul.f32 %v2465, %v2465
    %v2475 = vmul.f32 %v2466, %v2466
    %v2476 = vmul.f32 %v2467, %v2467
    %v2477 = vmul.f32 %v2468, %v2468
    %v2478 = vmul.f32 %v2469, %v2469
    %v2479 = vmul.f32 %v2470, %v2470
    %v2480 = vmul.f32 %v2471, %v2471
    %v2481 = vadd.f32 %v2473, %v2474
    %v2482 = vadd.f32 %v2481, %v2475
    %v2483 = vadd.f32 %v2482, %v2476
    %v2484 = vadd.f32 %v2483, %v2477
    %v2485 = vadd.f32 %v2484, %v2478
    %v2486 = vadd.f32 %v2485, %v2479
    %v2487 = vadd.f32 %v2486, %v2480
    %2488 = vadd.xlane.f32.xlu0 %v2487
    %v2489 = vpop.xlane.xlu0 %2488
    %v2490 = vadd.f32 %v2472, %v2489
    %vm2491 = vcmask 7168
    %2492 = vst.msk [vmem:[#allocation3] sm:$0xff] %vm2491, %v2490
    // Predicated region
    $region54: #{_vae_forward_jit.1} parent=1 // pred_check
      %p2493 = pneg %p70
    $region55: #{_vae_forward_jit.1} parent=1 // pred_check_branch
      %2495 = sbr.rel (%p2493) target = $region57
    $region56: #{_vae_forward_jit.1} parent=1 // pred_region
      %v2496 = vld [vmem:[#allocation3] sm:$0xff]
      %v2497 = vmul.f32 %v2496, 0.0009765625
      %v2498 = vld [vmem:[#allocation4] sm:$0xff]
      %v2499 = vadd.f32 %v2497, %v2498
      %v2500 = vlaneseq
      %v2501 = vand.u32 %v2500, 127
      %vm2502 = vcmp.eq.s32.totalorder %v2501, 0
      %vm2503 = vcmp.eq.s32.totalorder %v2501, 1
      %2505 = vset.pattern.permute.xlu0 0
      %2506 = vperm.xlu0 %2505, %v2497
      %v2507 = vpop.permute.xlu0 %2506
      %2510 = vset.pattern.permute.xlu0 0
      %2511 = vperm.xlu0 %2510, %v2498
      %v2512 = vpop.permute.xlu0 %2511
      %v2514 = vsel %vm2503, %v2507, %v2512
      %2516 = vset.pattern.permute.xlu0 0
      %2517 = vperm.xlu0 %2516, %v2499
      %v2518 = vpop.permute.xlu0 %2517
      %v2520 = vsel %vm2502, %v2518, %v2514
      %vm2521 = vcmask 23552
      %v2522 = vsel %vm2521, %v2520, 0.0
      %v2523 = vrot.slane %v2522, 4
      %v2524 = vadd.f32 %v2522, %v2523
      %v2525 = vrot.slane %v2524, 2
      %v2526 = vadd.f32 %v2524, %v2525
      %v2527 = vrot.slane %v2526, 1
      %v2528 = vadd.f32 %v2526, %v2527
      %v2529 = vmul.f32 %v2528, 0.125
      %vm2530 = vcmask 16384
      %2531 = vst.msk [vmem:[%s13] sm:$0x1] %vm2530, %v2529
    $region57: #{_vae_forward_jit.1} parent=1 // pred_fallthru
      _
    // Predicated region
    $region58: #{_vae_forward_jit.1} parent=1 // pred_check
      _
    $region59: #{_vae_forward_jit.1} parent=1 // pred_check_branch
      %2533 = sbr.rel (0) target = $region61
    $region60: #{_vae_forward_jit.1} parent=1 // pred_region
      _
    $region61: #{_vae_forward_jit.1} parent=1 // pred_fallthru
      _
    // Predicated region
    $region62: #{_vae_forward_jit.1} parent=1 // pred_check
      _
    $region63: #{_vae_forward_jit.1} parent=1 // pred_check_branch
      %2535 = sbr.rel (0) target = $region65
    $region64: #{_vae_forward_jit.1} parent=1 // pred_region
      %s2537 = ssub.s32 128, 128
      %2538 = vsyncadd [#allocation7], %s2537
      %s2540 = sshll.u32 [#allocation10], 4
      %s2541 = int_to_ptr.vmem [resolvable:$true] %s2540
      %2543 = dma.vmem_to_hbm [thread:$0]  %s2541, 128, %s11, [#allocation7]
    $region65: #{_vae_forward_jit.1} parent=1 // pred_fallthru
      _
    // Predicated region
    $region66: #{_vae_forward_jit.1} parent=1 // pred_check
      _
    $region67: #{_vae_forward_jit.1} parent=1 // pred_check_branch
      %2545 = sbr.rel (0) target = $region69
    $region68: #{_vae_forward_jit.1} parent=1 // pred_region
      %s2547 = ssub.s32 128, 128
      %2548 = vsyncadd [#allocation12], %s2547
      %s2550 = sshll.u32 [#allocation11], 4
      %s2551 = int_to_ptr.vmem [resolvable:$true] %s2550
      %2553 = dma.vmem_to_hbm [thread:$0]  %s2551, 128, %s12, [#allocation12]
    $region69: #{_vae_forward_jit.1} parent=1 // pred_fallthru
      _
    // Predicated region
    $region70: #{_vae_forward_jit.1} parent=1 // pred_check
      _
    $region71: #{_vae_forward_jit.1} parent=1 // pred_check_branch
      %2555 = sbr.rel (0) target = $region73
    $region72: #{_vae_forward_jit.1} parent=1 // pred_region
      _
    $region73: #{_vae_forward_jit.1} parent=1 // pred_fallthru
      _
    // Predicated region
    $region74: #{_vae_forward_jit.1} parent=1 // pred_check
      _
    $region75: #{_vae_forward_jit.1} parent=1 // pred_check_branch
      %2557 = sbr.rel (0) target = $region77
    $region76: #{_vae_forward_jit.1} parent=1 // pred_region
      _
    $region77: #{_vae_forward_jit.1} parent=1 // pred_fallthru
      _
    // Predicated region
    $region78: #{_vae_forward_jit.1} parent=1 // pred_check
      _
    $region79: #{_vae_forward_jit.1} parent=1 // pred_check_branch
      %2559 = sbr.rel (0) target = $region81
    $region80: #{_vae_forward_jit.1} parent=1 // pred_region
      %2560 = dma.done [#allocation7], 128
    $region81: #{_vae_forward_jit.1} parent=1 // pred_fallthru
      _
    // Predicated region
    $region82: #{_vae_forward_jit.1} parent=1 // pred_check
      _
    $region83: #{_vae_forward_jit.1} parent=1 // pred_check_branch
      %2562 = sbr.rel (0) target = $region85
    $region84: #{_vae_forward_jit.1} parent=1 // pred_region
      %2563 = dma.done [#allocation12], 128
    $region85: #{_vae_forward_jit.1} parent=1 // pred_fallthru
      _
    // Predicated region
    $region86: #{_vae_forward_jit.1} parent=1 // pred_check
      _
    $region87: #{_vae_forward_jit.1} parent=1 // pred_check_branch
      %2565 = sbr.rel (0) target = $region89
    $region88: #{_vae_forward_jit.1} parent=1 // pred_region
      _
    $region89: #{_vae_forward_jit.1} parent=1 // pred_fallthru
      _
    %2566 = vsyncpa [#allocation6], 1
    %2567 = vsyncpa [#allocation9], 1
    %2568 = vsyncpa [#allocation7], 1
    %2569 = vsyncpa [#allocation12], 1

</llo_original>
